<compile_context>
chip_gen: v5e
topology: v5e:2x2
jax: 0.10.0
libtpu: 0.0.40
codegen_flags: <defaults>
</compile_context>

<pallas_src>
import functools

import jax
import jax.numpy as jnp
from jax.experimental import pallas as pl
from jax.experimental.pallas import tpu as pltpu

IP_DIM = 28 * 28                        # 784
H1, H2, H3 = 14 * 14, 7 * 7, 3 * 3      # 196, 49, 9 (logical sizes)
H1P, H2P, H3P = 256, 128, 128           # lane-aligned padded sizes


def _round_up(n, m):
    return ((n + m - 1) // m) * m


def _autoencoder_kernel(x_ref,
                        w1_ref, b1_ref, w2_ref, b2_ref, w3_ref, b3_ref,
                        w4_ref, b4_ref, w5_ref, b5_ref, w6_ref, b6_ref,
                        e_ref, out_ref, *, approx_sigmoid):
    cdt = w1_ref.dtype  # MXU operand dtype (bf16 on the fast path)

    # ---- Encoder ----
    x = x_ref[...].astype(cdt)
    h = jnp.dot(x, w1_ref[...], preferred_element_type=jnp.float32) + b1_ref[...]
    h = jnp.maximum(h, 0.0)                                            # relu1
    h = jnp.dot(h.astype(cdt), w2_ref[...],
                preferred_element_type=jnp.float32) + b2_ref[...]
    h = jnp.maximum(h, 0.0)                                            # relu2
    e = jnp.dot(h.astype(cdt), w3_ref[...],
                preferred_element_type=jnp.float32) + b3_ref[...]
    e = jnp.maximum(e, 0.0)                                            # relu3
    e_ref[...] = e.astype(e_ref.dtype)   # lane-dense (TB, 128) bottleneck store

    # ---- Decoder ----
    h = jnp.dot(e.astype(cdt), w4_ref[...],
                preferred_element_type=jnp.float32) + b4_ref[...]
    h = jnp.maximum(h, 0.0)                                            # relu4
    h = jnp.dot(h.astype(cdt), w5_ref[...],
                preferred_element_type=jnp.float32) + b5_ref[...]
    h = jnp.maximum(h, 0.0)                                            # relu5
    y = jnp.dot(h.astype(cdt), w6_ref[...],
                preferred_element_type=jnp.float32) + b6_ref[...]
    if approx_sigmoid:
        # sigmoid = 1 / (1 + exp(-y)); exp and reciprocal both run on the EUP
        # slot, keeping the epilogue off the VALU (helps on v7x).
        y = pl.reciprocal(1.0 + jnp.exp(-y), approx=True)
    else:
        y = jax.nn.sigmoid(y)
    out_ref[...] = y.astype(out_ref.dtype)


def _pad2(a, rows, cols):
    r, c = a.shape
    return jnp.pad(a, ((0, rows - r), (0, cols - c)))


def _prepare_params(params, compute_dtype):
    """Pad weights/biases to lane-aligned sizes; weights cast to compute dtype,
    biases kept f32 (added after the f32-accumulated matmul)."""
    w = lambda k, r, c: _pad2(params[k], r, c).astype(compute_dtype)
    b = lambda k, c: _pad2(params[k], 1, c).astype(jnp.float32)
    return (w("w1", IP_DIM, H1P), b("b1", H1P),
            w("w2", H1P, H2P),    b("b2", H2P),
            w("w3", H2P, H3P),    b("b3", H3P),
            w("w4", H3P, H2P),    b("b4", H2P),
            w("w5", H2P, H1P),    b("b5", H1P),
            w("w6", H1P, IP_DIM), b("b6", IP_DIM))


@functools.partial(jax.jit, static_argnames=("block_b", "compute_dtype"))
def autoencoder_forward(x, params, *, block_b=1024, compute_dtype=jnp.bfloat16):
    """x: (B, 784) float32. Returns (e: (B, 9), y: (B, 784)).

    On the bf16 fast path (default) the outputs are bf16 (halves output HBM
    traffic); with compute_dtype=float32 everything stays f32."""
    B = x.shape[0]

    # --- Batch tiling: minimal padding + >=2 grid steps when B >= 16 so the
    # "parallel" axis can split across both v7x TensorCores.
    n_tiles = max(pl.cdiv(B, block_b), min(2, pl.cdiv(B, 8)))
    TB = _round_up(pl.cdiv(B, n_tiles), 8)       # batch tile (multiple of 8)
    B_pad = n_tiles * TB

    io_dtype = jnp.dtype(compute_dtype)          # bf16 I/O on the fast path
    x = x.astype(io_dtype)
    if B_pad != B:
        x = jnp.pad(x, ((0, B_pad - B), (0, 0)))

    wb = _prepare_params(params, compute_dtype)
    grid = (n_tiles,)

    batch_spec = lambda cols: pl.BlockSpec((TB, cols), lambda i: (i, 0))
    resident = lambda shape: pl.BlockSpec(shape, lambda i: (0, 0))

    in_specs = [batch_spec(IP_DIM)] + [resident(a.shape) for a in wb]
    out_specs = (batch_spec(H3P), batch_spec(IP_DIM))

    io_itemsize = io_dtype.itemsize
    flops = 2 * B_pad * (IP_DIM * H1P + H1P * H2P + H2P * H3P
                         + H3P * H2P + H2P * H1P + H1P * IP_DIM)
    bytes_accessed = (B_pad * IP_DIM * io_itemsize                  # x in
                      + B_pad * (IP_DIM + H3P) * io_itemsize        # y + e out
                      + sum(a.size * a.dtype.itemsize for a in wb))

    kernel = functools.partial(
        _autoencoder_kernel,
        approx_sigmoid=(io_dtype != jnp.dtype(jnp.float32)))

    e_pad, y = pl.pallas_call(
        kernel,
        out_shape=(jax.ShapeDtypeStruct((B_pad, H3P), io_dtype),
                   jax.ShapeDtypeStruct((B_pad, IP_DIM), io_dtype)),
        grid=grid,
        in_specs=in_specs,
        out_specs=out_specs,
        compiler_params=pltpu.CompilerParams(
            dimension_semantics=("parallel",),        # megacore split on v7x
            vmem_limit_bytes=56 * 1024 * 1024),       # safe on 64 MiB v7x VMEM
        cost_estimate=pl.CostEstimate(
            flops=flops,
            transcendentals=B_pad * IP_DIM,           # sigmoid exps
            bytes_accessed=bytes_accessed),
    )(x, *wb)

    # Slice padded lanes / padded batch rows back to logical shapes.
    return e_pad[:B, :H3], y[:B, :]


def init_params(key):
    """PyTorch nn.Linear-style init: U(-1/sqrt(fan_in), 1/sqrt(fan_in)).
    Weights stored pre-transposed as (in_features, out_features)."""
    dims = [(IP_DIM, H1), (H1, H2), (H2, H3), (H3, H2), (H2, H1), (H1, IP_DIM)]
    params = {}
    for i, (fan_in, fan_out) in enumerate(dims, start=1):
        key, kw, kb = jax.random.split(key, 3)
        bound = 1.0 / (fan_in ** 0.5)
        params[f"w{i}"] = jax.random.uniform(
            kw, (fan_in, fan_out), jnp.float32, minval=-bound, maxval=bound)
        params[f"b{i}"] = jax.random.uniform(
            kb, (1, fan_out), jnp.float32, minval=-bound, maxval=bound)
    return params


def reference_forward(x, params):
    """Plain-JAX f32 reference for correctness checking."""
    h = jax.nn.relu(x @ params["w1"] + params["b1"])
    h = jax.nn.relu(h @ params["w2"] + params["b2"])
    e = jax.nn.relu(h @ params["w3"] + params["b3"])
    h = jax.nn.relu(e @ params["w4"] + params["b4"])
    h = jax.nn.relu(h @ params["w5"] + params["b5"])
    y = jax.nn.sigmoid(h @ params["w6"] + params["b6"])
    return e, y


if __name__ == "__main__":
    key = jax.random.PRNGKey(0)
    key, kx = jax.random.split(key)

    batch = 16
    x = jax.random.uniform(kx, (batch, IP_DIM), jnp.float32)  # pixels in [0, 1)
    params = init_params(key)

    e_ref, y_ref = reference_forward(x, params)

    # 1) Exact path: f32 I/O + f32 matmuls + exact sigmoid, tight tolerance.
    e32, y32 = autoencoder_forward(x, params, compute_dtype=jnp.float32)
    jax.block_until_ready((e32, y32))
    assert e32.shape == (batch, H3) and y32.shape == (batch, IP_DIM)
    assert jnp.allclose(e32, e_ref, atol=1e-5, rtol=1e-5)
    assert jnp.allclose(y32, y_ref, atol=1e-5, rtol=1e-5)

    # 2) Fast path: bf16 MXU operands, bf16 I/O, f32 accumulation, EUP sigmoid.
    e, y = autoencoder_forward(x, params)  # compute_dtype=bf16 default
    jax.block_until_ready((e, y))
    assert e.shape == (batch, H3) and y.shape == (batch, IP_DIM)
    assert jnp.allclose(e.astype(jnp.float32), e_ref, atol=2e-2, rtol=2e-2)
    assert jnp.allclose(y.astype(jnp.float32), y_ref, atol=2e-2, rtol=2e-2)

    print("KERNEL_OK")
</pallas_src>

<mosaic_0001>
module attributes {stable_mosaic.version = 11 : i64} {
  func.func @_autoencoder_kernel(%arg0: i32, %arg1: memref<8x784xf32, #tpu.memory_space<vmem>>, %arg2: memref<784x256xf32, #tpu.memory_space<vmem>>, %arg3: memref<1x256xf32, #tpu.memory_space<vmem>>, %arg4: memref<256x128xf32, #tpu.memory_space<vmem>>, %arg5: memref<1x128xf32, #tpu.memory_space<vmem>>, %arg6: memref<128x128xf32, #tpu.memory_space<vmem>>, %arg7: memref<1x128xf32, #tpu.memory_space<vmem>>, %arg8: memref<128x128xf32, #tpu.memory_space<vmem>>, %arg9: memref<1x128xf32, #tpu.memory_space<vmem>>, %arg10: memref<128x256xf32, #tpu.memory_space<vmem>>, %arg11: memref<1x256xf32, #tpu.memory_space<vmem>>, %arg12: memref<256x784xf32, #tpu.memory_space<vmem>>, %arg13: memref<1x784xf32, #tpu.memory_space<vmem>>, %arg14: memref<8x128xf32, #tpu.memory_space<vmem>>, %arg15: memref<8x784xf32, #tpu.memory_space<vmem>>) attributes {dimension_semantics = [#tpu.dimension_semantics<parallel>], iteration_bounds = array<i64: 2>, scalar_prefetch = 0 : i64, scratch_operands = 0 : i64, tpu.core_type = #tpu.core_type<tc>, window_params = [{transform_indices = @transform_0, window_bounds = array<i64: 8, 784>}, {pipeline_mode = #tpu.pipeline_mode<synchronous>, transform_indices = @transform_1, window_bounds = array<i64: 784, 256>}, {pipeline_mode = #tpu.pipeline_mode<synchronous>, transform_indices = @transform_2, window_bounds = array<i64: 1, 256>}, {pipeline_mode = #tpu.pipeline_mode<synchronous>, transform_indices = @transform_3, window_bounds = array<i64: 256, 128>}, {pipeline_mode = #tpu.pipeline_mode<synchronous>, transform_indices = @transform_4, window_bounds = array<i64: 1, 128>}, {pipeline_mode = #tpu.pipeline_mode<synchronous>, transform_indices = @transform_5, window_bounds = array<i64: 128, 128>}, {pipeline_mode = #tpu.pipeline_mode<synchronous>, transform_indices = @transform_6, window_bounds = array<i64: 1, 128>}, {pipeline_mode = #tpu.pipeline_mode<synchronous>, transform_indices = @transform_7, window_bounds = array<i64: 128, 128>}, {pipeline_mode = #tpu.pipeline_mode<synchronous>, transform_indices = @transform_8, window_bounds = array<i64: 1, 128>}, {pipeline_mode = #tpu.pipeline_mode<synchronous>, transform_indices = @transform_9, window_bounds = array<i64: 128, 256>}, {pipeline_mode = #tpu.pipeline_mode<synchronous>, transform_indices = @transform_10, window_bounds = array<i64: 1, 256>}, {pipeline_mode = #tpu.pipeline_mode<synchronous>, transform_indices = @transform_11, window_bounds = array<i64: 256, 784>}, {pipeline_mode = #tpu.pipeline_mode<synchronous>, transform_indices = @transform_12, window_bounds = array<i64: 1, 784>}, {transform_indices = @transform_13, window_bounds = array<i64: 8, 128>}, {transform_indices = @transform_14, window_bounds = array<i64: 8, 784>}]} {
    %c0 = arith.constant 0 : index
    %c0_0 = arith.constant 0 : index
    %0 = vector.load %arg1[%c0, %c0_0] : memref<8x784xf32, #tpu.memory_space<vmem>>, vector<8x784xf32>
    %c0_1 = arith.constant 0 : index
    %c0_2 = arith.constant 0 : index
    %1 = vector.load %arg2[%c0_1, %c0_2] : memref<784x256xf32, #tpu.memory_space<vmem>>, vector<784x256xf32>
    %cst = arith.constant dense<0.000000e+00> : vector<8x256xf32>
    %2 = tpu.matmul %0, %1, %cst {dimension_numbers = #tpu.dot_dimension_numbers<[1], [0], [0], [1], [0, 0, 1, 1], [], []>} : vector<8x784xf32>, vector<784x256xf32>, vector<8x256xf32> -> vector<8x256xf32>
    %c0_3 = arith.constant 0 : index
    %c0_4 = arith.constant 0 : index
    %3 = vector.load %arg3[%c0_3, %c0_4] : memref<1x256xf32, #tpu.memory_space<vmem>>, vector<1x256xf32>
    %4 = vector.broadcast %3 : vector<1x256xf32> to vector<8x256xf32>
    %5 = arith.addf %2, %4 : vector<8x256xf32>
    %cst_5 = arith.constant 0.000000e+00 : f32
    %6 = vector.broadcast %cst_5 : f32 to vector<8x256xf32>
    %7 = arith.maximumf %5, %6 : vector<8x256xf32>
    %c0_6 = arith.constant 0 : index
    %c0_7 = arith.constant 0 : index
    %8 = vector.load %arg4[%c0_6, %c0_7] : memref<256x128xf32, #tpu.memory_space<vmem>>, vector<256x128xf32>
    %cst_8 = arith.constant dense<0.000000e+00> : vector<8x128xf32>
    %9 = tpu.matmul %7, %8, %cst_8 {dimension_numbers = #tpu.dot_dimension_numbers<[1], [0], [0], [1], [0, 0, 1, 1], [], []>} : vector<8x256xf32>, vector<256x128xf32>, vector<8x128xf32> -> vector<8x128xf32>
    %c0_9 = arith.constant 0 : index
    %c0_10 = arith.constant 0 : index
    %10 = vector.load %arg5[%c0_9, %c0_10] : memref<1x128xf32, #tpu.memory_space<vmem>>, vector<1x128xf32>
    %11 = vector.broadcast %10 : vector<1x128xf32> to vector<8x128xf32>
    %12 = arith.addf %9, %11 : vector<8x128xf32>
    %cst_11 = arith.constant 0.000000e+00 : f32
    %13 = vector.broadcast %cst_11 : f32 to vector<8x128xf32>
    %14 = arith.maximumf %12, %13 : vector<8x128xf32>
    %c0_12 = arith.constant 0 : index
    %c0_13 = arith.constant 0 : index
    %15 = vector.load %arg6[%c0_12, %c0_13] : memref<128x128xf32, #tpu.memory_space<vmem>>, vector<128x128xf32>
    %cst_14 = arith.constant dense<0.000000e+00> : vector<8x128xf32>
    %16 = tpu.matmul %14, %15, %cst_14 {dimension_numbers = #tpu.dot_dimension_numbers<[1], [0], [0], [1], [0, 0, 1, 1], [], []>} : vector<8x128xf32>, vector<128x128xf32>, vector<8x128xf32> -> vector<8x128xf32>
    %c0_15 = arith.constant 0 : index
    %c0_16 = arith.constant 0 : index
    %17 = vector.load %arg7[%c0_15, %c0_16] : memref<1x128xf32, #tpu.memory_space<vmem>>, vector<1x128xf32>
    %18 = vector.broadcast %17 : vector<1x128xf32> to vector<8x128xf32>
    %19 = arith.addf %16, %18 : vector<8x128xf32>
    %cst_17 = arith.constant 0.000000e+00 : f32
    %20 = vector.broadcast %cst_17 : f32 to vector<8x128xf32>
    %21 = arith.maximumf %19, %20 : vector<8x128xf32>
    %c0_18 = arith.constant 0 : index
    %c0_19 = arith.constant 0 : index
    %22 = vector.load %arg14[%c0_18, %c0_19] : memref<8x128xf32, #tpu.memory_space<vmem>>, vector<8x128xf32>
    tpu.vector_store %arg14[%c0_18, %c0_19], %21 {strides = array<i32>} : memref<8x128xf32, #tpu.memory_space<vmem>>, vector<8x128xf32>,
    %c0_20 = arith.constant 0 : index
    %c0_21 = arith.constant 0 : index
    %23 = vector.load %arg8[%c0_20, %c0_21] : memref<128x128xf32, #tpu.memory_space<vmem>>, vector<128x128xf32>
    %cst_22 = arith.constant dense<0.000000e+00> : vector<8x128xf32>
    %24 = tpu.matmul %21, %23, %cst_22 {dimension_numbers = #tpu.dot_dimension_numbers<[1], [0], [0], [1], [0, 0, 1, 1], [], []>} : vector<8x128xf32>, vector<128x128xf32>, vector<8x128xf32> -> vector<8x128xf32>
    %c0_23 = arith.constant 0 : index
    %c0_24 = arith.constant 0 : index
    %25 = vector.load %arg9[%c0_23, %c0_24] : memref<1x128xf32, #tpu.memory_space<vmem>>, vector<1x128xf32>
    %26 = vector.broadcast %25 : vector<1x128xf32> to vector<8x128xf32>
    %27 = arith.addf %24, %26 : vector<8x128xf32>
    %cst_25 = arith.constant 0.000000e+00 : f32
    %28 = vector.broadcast %cst_25 : f32 to vector<8x128xf32>
    %29 = arith.maximumf %27, %28 : vector<8x128xf32>
    %c0_26 = arith.constant 0 : index
    %c0_27 = arith.constant 0 : index
    %30 = vector.load %arg10[%c0_26, %c0_27] : memref<128x256xf32, #tpu.memory_space<vmem>>, vector<128x256xf32>
    %cst_28 = arith.constant dense<0.000000e+00> : vector<8x256xf32>
    %31 = tpu.matmul %29, %30, %cst_28 {dimension_numbers = #tpu.dot_dimension_numbers<[1], [0], [0], [1], [0, 0, 1, 1], [], []>} : vector<8x128xf32>, vector<128x256xf32>, vector<8x256xf32> -> vector<8x256xf32>
    %c0_29 = arith.constant 0 : index
    %c0_30 = arith.constant 0 : index
    %32 = vector.load %arg11[%c0_29, %c0_30] : memref<1x256xf32, #tpu.memory_space<vmem>>, vector<1x256xf32>
    %33 = vector.broadcast %32 : vector<1x256xf32> to vector<8x256xf32>
    %34 = arith.addf %31, %33 : vector<8x256xf32>
    %cst_31 = arith.constant 0.000000e+00 : f32
    %35 = vector.broadcast %cst_31 : f32 to vector<8x256xf32>
    %36 = arith.maximumf %34, %35 : vector<8x256xf32>
    %c0_32 = arith.constant 0 : index
    %c0_33 = arith.constant 0 : index
    %37 = vector.load %arg12[%c0_32, %c0_33] : memref<256x784xf32, #tpu.memory_space<vmem>>, vector<256x784xf32>
    %cst_34 = arith.constant dense<0.000000e+00> : vector<8x784xf32>
    %38 = tpu.matmul %36, %37, %cst_34 {dimension_numbers = #tpu.dot_dimension_numbers<[1], [0], [0], [1], [0, 0, 1, 1], [], []>} : vector<8x256xf32>, vector<256x784xf32>, vector<8x784xf32> -> vector<8x784xf32>
    %c0_35 = arith.constant 0 : index
    %c0_36 = arith.constant 0 : index
    %39 = vector.load %arg13[%c0_35, %c0_36] : memref<1x784xf32, #tpu.memory_space<vmem>>, vector<1x784xf32>
    %40 = vector.broadcast %39 : vector<1x784xf32> to vector<8x784xf32>
    %41 = arith.addf %38, %40 : vector<8x784xf32>
    %42 = arith.negf %41 : vector<8x784xf32>
    %43 = math.exp %42 : vector<8x784xf32>
    %cst_37 = arith.constant 1.000000e+00 : f32
    %44 = vector.broadcast %cst_37 : f32 to vector<8x784xf32>
    %45 = arith.addf %44, %43 : vector<8x784xf32>
    %46 = arith.divf %44, %45 : vector<8x784xf32>
    %c0_38 = arith.constant 0 : index
    %c0_39 = arith.constant 0 : index
    %47 = vector.load %arg15[%c0_38, %c0_39] : memref<8x784xf32, #tpu.memory_space<vmem>>, vector<8x784xf32>
    tpu.vector_store %arg15[%c0_38, %c0_39], %46 {strides = array<i32>} : memref<8x784xf32, #tpu.memory_space<vmem>>, vector<8x784xf32>,
    return
  }
  func.func @transform_0(%arg0: i32) -> (i32, i32) {
    %c0_i32 = arith.constant 0 : i32
    %c0_i32_0 = arith.constant 0 : i32
    return %arg0, %c0_i32 : i32, i32
  }
  func.func @transform_1(%arg0: i32) -> (i32, i32) {
    %c0_i32 = arith.constant 0 : i32
    %c0_i32_0 = arith.constant 0 : i32
    %c0_i32_1 = arith.constant 0 : i32
    return %c0_i32, %c0_i32_0 : i32, i32
  }
  func.func @transform_2(%arg0: i32) -> (i32, i32) {
    %c0_i32 = arith.constant 0 : i32
    %c0_i32_0 = arith.constant 0 : i32
    %c0_i32_1 = arith.constant 0 : i32
    return %c0_i32, %c0_i32_0 : i32, i32
  }
  func.func @transform_3(%arg0: i32) -> (i32, i32) {
    %c0_i32 = arith.constant 0 : i32
    %c0_i32_0 = arith.constant 0 : i32
    %c0_i32_1 = arith.constant 0 : i32
    return %c0_i32, %c0_i32_0 : i32, i32
  }
  func.func @transform_4(%arg0: i32) -> (i32, i32) {
    %c0_i32 = arith.constant 0 : i32
    %c0_i32_0 = arith.constant 0 : i32
    %c0_i32_1 = arith.constant 0 : i32
    return %c0_i32, %c0_i32_0 : i32, i32
  }
  func.func @transform_5(%arg0: i32) -> (i32, i32) {
    %c0_i32 = arith.constant 0 : i32
    %c0_i32_0 = arith.constant 0 : i32
    %c0_i32_1 = arith.constant 0 : i32
    return %c0_i32, %c0_i32_0 : i32, i32
  }
  func.func @transform_6(%arg0: i32) -> (i32, i32) {
    %c0_i32 = arith.constant 0 : i32
    %c0_i32_0 = arith.constant 0 : i32
    %c0_i32_1 = arith.constant 0 : i32
    return %c0_i32, %c0_i32_0 : i32, i32
  }
  func.func @transform_7(%arg0: i32) -> (i32, i32) {
    %c0_i32 = arith.constant 0 : i32
    %c0_i32_0 = arith.constant 0 : i32
    %c0_i32_1 = arith.constant 0 : i32
    return %c0_i32, %c0_i32_0 : i32, i32
  }
  func.func @transform_8(%arg0: i32) -> (i32, i32) {
    %c0_i32 = arith.constant 0 : i32
    %c0_i32_0 = arith.constant 0 : i32
    %c0_i32_1 = arith.constant 0 : i32
    return %c0_i32, %c0_i32_0 : i32, i32
  }
  func.func @transform_9(%arg0: i32) -> (i32, i32) {
    %c0_i32 = arith.constant 0 : i32
    %c0_i32_0 = arith.constant 0 : i32
    %c0_i32_1 = arith.constant 0 : i32
    return %c0_i32, %c0_i32_0 : i32, i32
  }
  func.func @transform_10(%arg0: i32) -> (i32, i32) {
    %c0_i32 = arith.constant 0 : i32
    %c0_i32_0 = arith.constant 0 : i32
    %c0_i32_1 = arith.constant 0 : i32
    return %c0_i32, %c0_i32_0 : i32, i32
  }
  func.func @transform_11(%arg0: i32) -> (i32, i32) {
    %c0_i32 = arith.constant 0 : i32
    %c0_i32_0 = arith.constant 0 : i32
    %c0_i32_1 = arith.constant 0 : i32
    return %c0_i32, %c0_i32_0 : i32, i32
  }
  func.func @transform_12(%arg0: i32) -> (i32, i32) {
    %c0_i32 = arith.constant 0 : i32
    %c0_i32_0 = arith.constant 0 : i32
    %c0_i32_1 = arith.constant 0 : i32
    return %c0_i32, %c0_i32_0 : i32, i32
  }
  func.func @transform_13(%arg0: i32) -> (i32, i32) {
    %c0_i32 = arith.constant 0 : i32
    %c0_i32_0 = arith.constant 0 : i32
    return %arg0, %c0_i32 : i32, i32
  }
  func.func @transform_14(%arg0: i32) -> (i32, i32) {
    %c0_i32 = arith.constant 0 : i32
    %c0_i32_0 = arith.constant 0 : i32
    return %arg0, %c0_i32 : i32, i32
  }
}

</mosaic_0001>

<llo_original>
// kernel: autoencoder_forward.1
$region0: #{autoencoder_forward.1}
  #allocation0 [shape = 'u32[]', space=smem, size = 0x4, offset = 0x4, fixed_abs, tag = 'smem constant byte address 0x4 - core index']
  #allocation1 [shape = 'u32[72,128]{1,0:T(1,128)}', space=vmem, size = 0x9000, scoped, tag = 'internal scratch']
  %s0 = inlined_call_operand.vmem [shape: f32[16,784], index: 0, kind: input, shape index: {}]
  %s1 = inlined_call_operand.vmem [shape: f32[784,256], index: 1, kind: input, shape index: {}]
  %s2 = inlined_call_operand.vmem [shape: f32[1,256], index: 2, kind: input, shape index: {}]
  %s3 = inlined_call_operand.vmem [shape: f32[256,128], index: 3, kind: input, shape index: {}]
  %s4 = inlined_call_operand.vmem [shape: f32[1,128], index: 4, kind: input, shape index: {}]
  %s5 = inlined_call_operand.vmem [shape: f32[128,128], index: 5, kind: input, shape index: {}]
  %s6 = inlined_call_operand.vmem [shape: f32[1,128], index: 6, kind: input, shape index: {}]
  %s7 = inlined_call_operand.vmem [shape: f32[128,128], index: 7, kind: input, shape index: {}]
  %s8 = inlined_call_operand.vmem [shape: f32[1,128], index: 8, kind: input, shape index: {}]
  %s9 = inlined_call_operand.vmem [shape: f32[128,256], index: 9, kind: input, shape index: {}]
  %s10 = inlined_call_operand.vmem [shape: f32[1,256], index: 10, kind: input, shape index: {}]
  %s11 = inlined_call_operand.vmem [shape: f32[256,784], index: 11, kind: input, shape index: {}]
  %s12 = inlined_call_operand.vmem [shape: f32[1,784], index: 12, kind: input, shape index: {}]
  %s13 = inlined_call_operand.hbm [shape: f32[16,128], index: 13, kind: output, shape index: {0}]
  %s14 = inlined_call_operand.hbm [shape: f32[16,784], index: 14, kind: output, shape index: {1}]
  %15 = xla_tuple %s13, %s14
  %s16 = sld [smem:[#allocation0]]
  $region93: #{autoencoder_forward.1} parent=0
    _
  %s18 = ssub.s32 1, %s16
  %s19 = scalar_select 0, %s18, %s16
  $region1: #{autoencoder_forward.1} parent=0
    #allocation2 [shape = 'u8[8192]{0}', space=vmem, size = 0x2000, scoped, tag = 'output window, operand 0']
    #allocation3 [shape = 's32[2]{0}', space=sflag, size = 0x8, scoped, tag = 'scoped memory for autoencoder_forward.1']
    #allocation4 [shape = 'u8[57344]{0}', space=vmem, size = 0xe000, scoped, tag = 'output window, operand 1']
    #allocation5 [shape = 's32[2]{0}', space=sflag, size = 0x8, scoped, tag = 'scoped memory for autoencoder_forward.1']
    %20 = vsyncpa [#allocation3], 0
    %s21 = scalar_lea.sflag [#allocation3], 1
    %22 = vsyncpa %s21, 0
    %23 = vsyncpa [#allocation5], 0
    %s24 = scalar_lea.sflag [#allocation5], 1
    %25 = vsyncpa %s24, 0
    loop: start=0, step=1, limit=4
    $region2: #{autoencoder_forward.1} parent=1 // loop_pre_header
      _
    $region3: #{autoencoder_forward.1} parent=1 // loop_header
      %s27 = sphi 0, %s31
      %p28 = scmp.ge.s32.totalorder %s27, 4
      %s37 = sphi 0, %s39
      %s40 = sphi 0, %s37
      %s41 = sphi 0, %s40
      %s57 = sphi 0, %s41
      %s61 = sphi 0, %s61
      %s63 = sphi 0, %s61
      %s64 = sphi 0, %s63
      %s78 = sphi 0, %s64
      %s82 = sphi 0, %s82
      %s84 = sphi 0, %s82
      %s85 = sphi 0, %s84
      %s99 = sphi 0, %s85
      %s103 = sphi 0, %s103
      %s105 = sphi 0, %s103
      %s106 = sphi 0, %s105
      %s120 = sphi 0, %s106
      %s124 = sphi 0, %s124
      %s126 = sphi 0, %s124
      %s127 = sphi 0, %s126
      %s141 = sphi 0, %s127
      %s145 = sphi 0, %s145
      %s147 = sphi 0, %s145
      %s148 = sphi 0, %s147
      %s162 = sphi 0, %s148
      %s166 = sphi 0, %s166
      %s168 = sphi 0, %s166
      %s169 = sphi 0, %s168
      %s183 = sphi 0, %s169
      %s187 = sphi 0, %s187
      %s189 = sphi 0, %s187
      %s190 = sphi 0, %s189
      %s204 = sphi 0, %s190
      %s208 = sphi 0, %s208
      %s210 = sphi 0, %s208
      %s211 = sphi 0, %s210
      %s225 = sphi 0, %s211
      %s229 = sphi 0, %s229
      %s231 = sphi 0, %s229
      %s232 = sphi 0, %s231
      %s246 = sphi 0, %s232
      %s250 = sphi 0, %s250
      %s252 = sphi 0, %s250
      %s253 = sphi 0, %s252
      %s267 = sphi 0, %s253
      %s271 = sphi 0, %s271
      %s273 = sphi 0, %s271
      %s274 = sphi 0, %s273
      %s288 = sphi 0, %s274
      %s292 = sphi 0, %s292
      %s294 = sphi 0, %s292
      %s295 = sphi 0, %s294
      %s309 = sphi 0, %s295
      %s315 = sphi 0, %s317
      %s318 = sphi 0, %s315
      %s319 = sphi 0, %s318
      %s335 = sphi 0, %s319
      %s341 = sphi 0, %s343
      %s344 = sphi 0, %s341
      %s345 = sphi 0, %s344
      %s361 = sphi 0, %s345
    $region4: #{autoencoder_forward.1} parent=1 // loop_header_branch
      %30 = sbr.rel (%p28) target = $region8
    $region5: #{autoencoder_forward.1} parent=1 // loop_body
      %s32 = ssub.s32 %s27, 1
      %s33 = ssub.s32 %s27, 2
      %s34 = sadd.s32 %s27, 1
      %s35 = ssub.s32 %s27, %s34
      %p36 = scmp.eq.s32.totalorder %s35, 0
      %s38 = sadd.s32 %s37, 1
      %s39 = scalar_select %p36, %s37, %s38
      %p42 = pneg %p36
      %p43 = scmp.eq.s32.totalorder %s27, 1
      %p44 = por %p42, %p43
      %p45 = scmp.ne.s32.totalorder %s37, %s40
      %p46 = scmp.eq.s32.totalorder %s27, 0
      %p47 = por %p45, %p46
      %p48 = scmp.ne.s32.totalorder %s37, %s40
      %p49 = scmp.eq.s32.totalorder %s32, 1
      %p50 = por %p48, %p49
      %p51 = scmp.ne.s32.totalorder %s40, %s41
      %p52 = scmp.eq.s32.totalorder %s32, 0
      %p53 = por %p51, %p52
      %p54 = scmp.ne.s32.totalorder %s40, %s41
      %p55 = scmp.eq.s32.totalorder %s33, 1
      %p56 = por %p54, %p55
      %p58 = scmp.ne.s32.totalorder %s41, %s57
      %p59 = scmp.eq.s32.totalorder %s33, 0
      %p60 = por %p58, %p59
      %s62 = sadd.s32 %s61, 1
      %p65 = scmp.eq.s32.totalorder %s27, 1
      %p66 = scmp.ne.s32.totalorder %s61, %s63
      %p67 = scmp.eq.s32.totalorder %s27, 0
      %p68 = por %p66, %p67
      %p69 = scmp.ne.s32.totalorder %s61, %s63
      %p70 = scmp.eq.s32.totalorder %s32, 1
      %p71 = por %p69, %p70
      %p72 = scmp.ne.s32.totalorder %s63, %s64
      %p73 = scmp.eq.s32.totalorder %s32, 0
      %p74 = por %p72, %p73
      %p75 = scmp.ne.s32.totalorder %s63, %s64
      %p76 = scmp.eq.s32.totalorder %s33, 1
      %p77 = por %p75, %p76
      %p79 = scmp.ne.s32.totalorder %s64, %s78
      %p80 = scmp.eq.s32.totalorder %s33, 0
      %p81 = por %p79, %p80
      %s83 = sadd.s32 %s82, 1
      %p86 = scmp.eq.s32.totalorder %s27, 1
      %p87 = scmp.ne.s32.totalorder %s82, %s84
      %p88 = scmp.eq.s32.totalorder %s27, 0
      %p89 = por %p87, %p88
      %p90 = scmp.ne.s32.totalorder %s82, %s84
      %p91 = scmp.eq.s32.totalorder %s32, 1
      %p92 = por %p90, %p91
      %p93 = scmp.ne.s32.totalorder %s84, %s85
      %p94 = scmp.eq.s32.totalorder %s32, 0
      %p95 = por %p93, %p94
      %p96 = scmp.ne.s32.totalorder %s84, %s85
      %p97 = scmp.eq.s32.totalorder %s33, 1
      %p98 = por %p96, %p97
      %p100 = scmp.ne.s32.totalorder %s85, %s99
      %p101 = scmp.eq.s32.totalorder %s33, 0
      %p102 = por %p100, %p101
      %s104 = sadd.s32 %s103, 1
      %p107 = scmp.eq.s32.totalorder %s27, 1
      %p108 = scmp.ne.s32.totalorder %s103, %s105
      %p109 = scmp.eq.s32.totalorder %s27, 0
      %p110 = por %p108, %p109
      %p111 = scmp.ne.s32.totalorder %s103, %s105
      %p112 = scmp.eq.s32.totalorder %s32, 1
      %p113 = por %p111, %p112
      %p114 = scmp.ne.s32.totalorder %s105, %s106
      %p115 = scmp.eq.s32.totalorder %s32, 0
      %p116 = por %p114, %p115
      %p117 = scmp.ne.s32.totalorder %s105, %s106
      %p118 = scmp.eq.s32.totalorder %s33, 1
      %p119 = por %p117, %p118
      %p121 = scmp.ne.s32.totalorder %s106, %s120
      %p122 = scmp.eq.s32.totalorder %s33, 0
      %p123 = por %p121, %p122
      %s125 = sadd.s32 %s124, 1
      %p128 = scmp.eq.s32.totalorder %s27, 1
      %p129 = scmp.ne.s32.totalorder %s124, %s126
      %p130 = scmp.eq.s32.totalorder %s27, 0
      %p131 = por %p129, %p130
      %p132 = scmp.ne.s32.totalorder %s124, %s126
      %p133 = scmp.eq.s32.totalorder %s32, 1
      %p134 = por %p132, %p133
      %p135 = scmp.ne.s32.totalorder %s126, %s127
      %p136 = scmp.eq.s32.totalorder %s32, 0
      %p137 = por %p135, %p136
      %p138 = scmp.ne.s32.totalorder %s126, %s127
      %p139 = scmp.eq.s32.totalorder %s33, 1
      %p140 = por %p138, %p139
      %p142 = scmp.ne.s32.totalorder %s127, %s141
      %p143 = scmp.eq.s32.totalorder %s33, 0
      %p144 = por %p142, %p143
      %s146 = sadd.s32 %s145, 1
      %p149 = scmp.eq.s32.totalorder %s27, 1
      %p150 = scmp.ne.s32.totalorder %s145, %s147
      %p151 = scmp.eq.s32.totalorder %s27, 0
      %p152 = por %p150, %p151
      %p153 = scmp.ne.s32.totalorder %s145, %s147
      %p154 = scmp.eq.s32.totalorder %s32, 1
      %p155 = por %p153, %p154
      %p156 = scmp.ne.s32.totalorder %s147, %s148
      %p157 = scmp.eq.s32.totalorder %s32, 0
      %p158 = por %p156, %p157
      %p159 = scmp.ne.s32.totalorder %s147, %s148
      %p160 = scmp.eq.s32.totalorder %s33, 1
      %p161 = por %p159, %p160
      %p163 = scmp.ne.s32.totalorder %s148, %s162
      %p164 = scmp.eq.s32.totalorder %s33, 0
      %p165 = por %p163, %p164
      %s167 = sadd.s32 %s166, 1
      %p170 = scmp.eq.s32.totalorder %s27, 1
      %p171 = scmp.ne.s32.totalorder %s166, %s168
      %p172 = scmp.eq.s32.totalorder %s27, 0
      %p173 = por %p171, %p172
      %p174 = scmp.ne.s32.totalorder %s166, %s168
      %p175 = scmp.eq.s32.totalorder %s32, 1
      %p176 = por %p174, %p175
      %p177 = scmp.ne.s32.totalorder %s168, %s169
      %p178 = scmp.eq.s32.totalorder %s32, 0
      %p179 = por %p177, %p178
      %p180 = scmp.ne.s32.totalorder %s168, %s169
      %p181 = scmp.eq.s32.totalorder %s33, 1
      %p182 = por %p180, %p181
      %p184 = scmp.ne.s32.totalorder %s169, %s183
      %p185 = scmp.eq.s32.totalorder %s33, 0
      %p186 = por %p184, %p185
      %s188 = sadd.s32 %s187, 1
      %p191 = scmp.eq.s32.totalorder %s27, 1
      %p192 = scmp.ne.s32.totalorder %s187, %s189
      %p193 = scmp.eq.s32.totalorder %s27, 0
      %p194 = por %p192, %p193
      %p195 = scmp.ne.s32.totalorder %s187, %s189
      %p196 = scmp.eq.s32.totalorder %s32, 1
      %p197 = por %p195, %p196
      %p198 = scmp.ne.s32.totalorder %s189, %s190
      %p199 = scmp.eq.s32.totalorder %s32, 0
      %p200 = por %p198, %p199
      %p201 = scmp.ne.s32.totalorder %s189, %s190
      %p202 = scmp.eq.s32.totalorder %s33, 1
      %p203 = por %p201, %p202
      %p205 = scmp.ne.s32.totalorder %s190, %s204
      %p206 = scmp.eq.s32.totalorder %s33, 0
      %p207 = por %p205, %p206
      %s209 = sadd.s32 %s208, 1
      %p212 = scmp.eq.s32.totalorder %s27, 1
      %p213 = scmp.ne.s32.totalorder %s208, %s210
      %p214 = scmp.eq.s32.totalorder %s27, 0
      %p215 = por %p213, %p214
      %p216 = scmp.ne.s32.totalorder %s208, %s210
      %p217 = scmp.eq.s32.totalorder %s32, 1
      %p218 = por %p216, %p217
      %p219 = scmp.ne.s32.totalorder %s210, %s211
      %p220 = scmp.eq.s32.totalorder %s32, 0
      %p221 = por %p219, %p220
      %p222 = scmp.ne.s32.totalorder %s210, %s211
      %p223 = scmp.eq.s32.totalorder %s33, 1
      %p224 = por %p222, %p223
      %p226 = scmp.ne.s32.totalorder %s211, %s225
      %p227 = scmp.eq.s32.totalorder %s33, 0
      %p228 = por %p226, %p227
      %s230 = sadd.s32 %s229, 1
      %p233 = scmp.eq.s32.totalorder %s27, 1
      %p234 = scmp.ne.s32.totalorder %s229, %s231
      %p235 = scmp.eq.s32.totalorder %s27, 0
      %p236 = por %p234, %p235
      %p237 = scmp.ne.s32.totalorder %s229, %s231
      %p238 = scmp.eq.s32.totalorder %s32, 1
      %p239 = por %p237, %p238
      %p240 = scmp.ne.s32.totalorder %s231, %s232
      %p241 = scmp.eq.s32.totalorder %s32, 0
      %p242 = por %p240, %p241
      %p243 = scmp.ne.s32.totalorder %s231, %s232
      %p244 = scmp.eq.s32.totalorder %s33, 1
      %p245 = por %p243, %p244
      %p247 = scmp.ne.s32.totalorder %s232, %s246
      %p248 = scmp.eq.s32.totalorder %s33, 0
      %p249 = por %p247, %p248
      %s251 = sadd.s32 %s250, 1
      %p254 = scmp.eq.s32.totalorder %s27, 1
      %p255 = scmp.ne.s32.totalorder %s250, %s252
      %p256 = scmp.eq.s32.totalorder %s27, 0
      %p257 = por %p255, %p256
      %p258 = scmp.ne.s32.totalorder %s250, %s252
      %p259 = scmp.eq.s32.totalorder %s32, 1
      %p260 = por %p258, %p259
      %p261 = scmp.ne.s32.totalorder %s252, %s253
      %p262 = scmp.eq.s32.totalorder %s32, 0
      %p263 = por %p261, %p262
      %p264 = scmp.ne.s32.totalorder %s252, %s253
      %p265 = scmp.eq.s32.totalorder %s33, 1
      %p266 = por %p264, %p265
      %p268 = scmp.ne.s32.totalorder %s253, %s267
      %p269 = scmp.eq.s32.totalorder %s33, 0
      %p270 = por %p268, %p269
      %s272 = sadd.s32 %s271, 1
      %p275 = scmp.eq.s32.totalorder %s27, 1
      %p276 = scmp.ne.s32.totalorder %s271, %s273
      %p277 = scmp.eq.s32.totalorder %s27, 0
      %p278 = por %p276, %p277
      %p279 = scmp.ne.s32.totalorder %s271, %s273
      %p280 = scmp.eq.s32.totalorder %s32, 1
      %p281 = por %p279, %p280
      %p282 = scmp.ne.s32.totalorder %s273, %s274
      %p283 = scmp.eq.s32.totalorder %s32, 0
      %p284 = por %p282, %p283
      %p285 = scmp.ne.s32.totalorder %s273, %s274
      %p286 = scmp.eq.s32.totalorder %s33, 1
      %p287 = por %p285, %p286
      %p289 = scmp.ne.s32.totalorder %s274, %s288
      %p290 = scmp.eq.s32.totalorder %s33, 0
      %p291 = por %p289, %p290
      %s293 = sadd.s32 %s292, 1
      %p296 = scmp.eq.s32.totalorder %s27, 1
      %p297 = scmp.ne.s32.totalorder %s292, %s294
      %p298 = scmp.eq.s32.totalorder %s27, 0
      %p299 = por %p297, %p298
      %p300 = scmp.ne.s32.totalorder %s292, %s294
      %p301 = scmp.eq.s32.totalorder %s32, 1
      %p302 = por %p300, %p301
      %p303 = scmp.ne.s32.totalorder %s294, %s295
      %p304 = scmp.eq.s32.totalorder %s32, 0
      %p305 = por %p303, %p304
      %p306 = scmp.ne.s32.totalorder %s294, %s295
      %p307 = scmp.eq.s32.totalorder %s33, 1
      %p308 = por %p306, %p307
      %p310 = scmp.ne.s32.totalorder %s295, %s309
      %p311 = scmp.eq.s32.totalorder %s33, 0
      %p312 = por %p310, %p311
      %s313 = ssub.s32 %s27, %s34
      %p314 = scmp.eq.s32.totalorder %s313, 0
      %s316 = sadd.s32 %s315, 1
      %s317 = scalar_select %p314, %s315, %s316
      %p320 = pneg %p314
      %p321 = scmp.eq.s32.totalorder %s27, 1
      %p322 = por %p320, %p321
      %p323 = scmp.ne.s32.totalorder %s315, %s318
      %p324 = scmp.eq.s32.totalorder %s27, 0
      %p325 = por %p323, %p324
      %p326 = scmp.ne.s32.totalorder %s315, %s318
      %p327 = scmp.eq.s32.totalorder %s32, 1
      %p328 = por %p326, %p327
      %p329 = scmp.ne.s32.totalorder %s318, %s319
      %p330 = scmp.eq.s32.totalorder %s32, 0
      %p331 = por %p329, %p330
      %p332 = scmp.ne.s32.totalorder %s318, %s319
      %p333 = scmp.eq.s32.totalorder %s33, 1
      %p334 = por %p332, %p333
      %p336 = scmp.ne.s32.totalorder %s319, %s335
      %p337 = scmp.eq.s32.totalorder %s33, 0
      %p338 = por %p336, %p337
      %s339 = ssub.s32 %s27, %s34
      %p340 = scmp.eq.s32.totalorder %s339, 0
      %s342 = sadd.s32 %s341, 1
      %s343 = scalar_select %p340, %s341, %s342
      %p346 = pneg %p340
      %p347 = scmp.eq.s32.totalorder %s27, 1
      %p348 = por %p346, %p347
      %p349 = scmp.ne.s32.totalorder %s341, %s344
      %p350 = scmp.eq.s32.totalorder %s27, 0
      %p351 = por %p349, %p350
      %p352 = scmp.ne.s32.totalorder %s341, %s344
      %p353 = scmp.eq.s32.totalorder %s32, 1
      %p354 = por %p352, %p353
      %p355 = scmp.ne.s32.totalorder %s344, %s345
      %p356 = scmp.eq.s32.totalorder %s32, 0
      %p357 = por %p355, %p356
      %p358 = scmp.ne.s32.totalorder %s344, %s345
      %p359 = scmp.eq.s32.totalorder %s33, 1
      %p360 = por %p358, %p359
      %p362 = scmp.ne.s32.totalorder %s345, %s361
      %p363 = scmp.eq.s32.totalorder %s33, 0
      %p364 = por %p362, %p363
      %p365 = scmp.le.s32.totalorder 1, %s27
      %p366 = scmp.lt.s32.totalorder %s27, 3
      %p367 = pnand %p365, %p366
      %p368 = pneg %p367
      // Predicated region
      $region9: #{autoencoder_forward.1} parent=5 // pred_check
        _
      $region10: #{autoencoder_forward.1} parent=5 // pred_check_branch
        %370 = sbr.rel (%p367) target = $region12
      $region11: #{autoencoder_forward.1} parent=5 // pred_region
        %s371 = ssub.s32 %s27, 1
        // Predicated region
        $region13: #{autoencoder_forward.1} parent=11 // pred_check
          %p372 = pneg %p74
        $region14: #{autoencoder_forward.1} parent=11 // pred_check_branch
          %374 = sbr.rel (%p372) target = $region16
        $region15: #{autoencoder_forward.1} parent=11 // pred_region
          _
        $region16: #{autoencoder_forward.1} parent=11 // pred_fallthru
          _
        // Predicated region
        $region17: #{autoencoder_forward.1} parent=11 // pred_check
          %p375 = pneg %p95
        $region18: #{autoencoder_forward.1} parent=11 // pred_check_branch
          %377 = sbr.rel (%p375) target = $region20
        $region19: #{autoencoder_forward.1} parent=11 // pred_region
          _
        $region20: #{autoencoder_forward.1} parent=11 // pred_fallthru
          _
        // Predicated region
        $region21: #{autoencoder_forward.1} parent=11 // pred_check
          %p378 = pneg %p116
        $region22: #{autoencoder_forward.1} parent=11 // pred_check_branch
          %380 = sbr.rel (%p378) target = $region24
        $region23: #{autoencoder_forward.1} parent=11 // pred_region
          _
        $region24: #{autoencoder_forward.1} parent=11 // pred_fallthru
          _
        // Predicated region
        $region25: #{autoencoder_forward.1} parent=11 // pred_check
          %p381 = pneg %p137
        $region26: #{autoencoder_forward.1} parent=11 // pred_check_branch
          %383 = sbr.rel (%p381) target = $region28
        $region27: #{autoencoder_forward.1} parent=11 // pred_region
          _
        $region28: #{autoencoder_forward.1} parent=11 // pred_fallthru
          _
        // Predicated region
        $region29: #{autoencoder_forward.1} parent=11 // pred_check
          %p384 = pneg %p158
        $region30: #{autoencoder_forward.1} parent=11 // pred_check_branch
          %386 = sbr.rel (%p384) target = $region32
        $region31: #{autoencoder_forward.1} parent=11 // pred_region
          _
        $region32: #{autoencoder_forward.1} parent=11 // pred_fallthru
          _
        // Predicated region
        $region33: #{autoencoder_forward.1} parent=11 // pred_check
          %p387 = pneg %p179
        $region34: #{autoencoder_forward.1} parent=11 // pred_check_branch
          %389 = sbr.rel (%p387) target = $region36
        $region35: #{autoencoder_forward.1} parent=11 // pred_region
          _
        $region36: #{autoencoder_forward.1} parent=11 // pred_fallthru
          _
        // Predicated region
        $region37: #{autoencoder_forward.1} parent=11 // pred_check
          %p390 = pneg %p200
        $region38: #{autoencoder_forward.1} parent=11 // pred_check_branch
          %392 = sbr.rel (%p390) target = $region40
        $region39: #{autoencoder_forward.1} parent=11 // pred_region
          _
        $region40: #{autoencoder_forward.1} parent=11 // pred_fallthru
          _
        // Predicated region
        $region41: #{autoencoder_forward.1} parent=11 // pred_check
          %p393 = pneg %p221
        $region42: #{autoencoder_forward.1} parent=11 // pred_check_branch
          %395 = sbr.rel (%p393) target = $region44
        $region43: #{autoencoder_forward.1} parent=11 // pred_region
          _
        $region44: #{autoencoder_forward.1} parent=11 // pred_fallthru
          _
        // Predicated region
        $region45: #{autoencoder_forward.1} parent=11 // pred_check
          %p396 = pneg %p242
        $region46: #{autoencoder_forward.1} parent=11 // pred_check_branch
          %398 = sbr.rel (%p396) target = $region48
        $region47: #{autoencoder_forward.1} parent=11 // pred_region
          _
        $region48: #{autoencoder_forward.1} parent=11 // pred_fallthru
          _
        // Predicated region
        $region49: #{autoencoder_forward.1} parent=11 // pred_check
          %p399 = pneg %p263
        $region50: #{autoencoder_forward.1} parent=11 // pred_check_branch
          %401 = sbr.rel (%p399) target = $region52
        $region51: #{autoencoder_forward.1} parent=11 // pred_region
          _
        $region52: #{autoencoder_forward.1} parent=11 // pred_fallthru
          _
        // Predicated region
        $region53: #{autoencoder_forward.1} parent=11 // pred_check
          %p402 = pneg %p284
        $region54: #{autoencoder_forward.1} parent=11 // pred_check_branch
          %404 = sbr.rel (%p402) target = $region56
        $region55: #{autoencoder_forward.1} parent=11 // pred_region
          _
        $region56: #{autoencoder_forward.1} parent=11 // pred_fallthru
          _
        // Predicated region
        $region57: #{autoencoder_forward.1} parent=11 // pred_check
          %p405 = pneg %p305
        $region58: #{autoencoder_forward.1} parent=11 // pred_check_branch
          %407 = sbr.rel (%p405) target = $region60
        $region59: #{autoencoder_forward.1} parent=11 // pred_region
          _
        $region60: #{autoencoder_forward.1} parent=11 // pred_fallthru
          _
      $region12: #{autoencoder_forward.1} parent=5 // pred_fallthru
        _
      %p408 = scmp.lt.s32.totalorder %s27, 2
      // Predicated region
      $region61: #{autoencoder_forward.1} parent=5 // pred_check
        %p409 = pneg %p408
      $region62: #{autoencoder_forward.1} parent=5 // pred_check_branch
        %411 = sbr.rel (%p409) target = $region64
      $region63: #{autoencoder_forward.1} parent=5 // pred_region
        // Predicated region
        $region65: #{autoencoder_forward.1} parent=63 // pred_check
          %p412 = pneg %p47
        $region66: #{autoencoder_forward.1} parent=63 // pred_check_branch
          %414 = sbr.rel (%p412) target = $region68
        $region67: #{autoencoder_forward.1} parent=63 // pred_region
          %p415 = scmp.lt.s32.totalorder %s27, 1
          %s416 = scalar_select %p415, %s27, 1
          %s417 = smul.addr %s416, 7
          %s418 = smul.addr %s417, 8
          %s419 = scalar_lea.vmem %s0, %s418
        $region68: #{autoencoder_forward.1} parent=63 // pred_fallthru
          _
      $region64: #{autoencoder_forward.1} parent=5 // pred_fallthru
        _
      %p420 = scmp.le.s32.totalorder 1, %s27
      %p421 = scmp.lt.s32.totalorder %s27, 3
      %p422 = pnand %p420, %p421
      %p423 = pneg %p422
      // Predicated region
      $region69: #{autoencoder_forward.1} parent=5 // pred_check
        _
      $region70: #{autoencoder_forward.1} parent=5 // pred_check_branch
        %425 = sbr.rel (%p422) target = $region72
      $region71: #{autoencoder_forward.1} parent=5 // pred_region
        %s426 = ssub.s32 %s27, 1
        %p427 = scmp.lt.s32.totalorder %s32, 1
        %s428 = scalar_select %p427, %s32, 1
        %s429 = smul.addr %s428, 7
        %s430 = smul.addr %s429, 8
        %s431 = scalar_lea.vmem %s0, %s430
        %p432 = pneg %p53
        %p433 = pneg %p50
        %p434 = pneg %p74
        %p435 = pneg %p71
        %p436 = pneg %p95
        %p437 = pneg %p92
        %p438 = pneg %p116
        %p439 = pneg %p113
        %p440 = pneg %p137
        %p441 = pneg %p134
        %p442 = pneg %p158
        %p443 = pneg %p155
        %p444 = pneg %p179
        %p445 = pneg %p176
        %p446 = pneg %p200
        %p447 = pneg %p197
        %p448 = pneg %p221
        %p449 = pneg %p218
        %p450 = pneg %p242
        %p451 = pneg %p239
        %p452 = pneg %p263
        %p453 = pneg %p260
        %p454 = pneg %p284
        %p455 = pneg %p281
        %p456 = pneg %p305
        %p457 = pneg %p302
        %p458 = pneg %p331
        %p459 = pneg %p328
        %s460 = sand.u32 %s318, 1
        %s461 = scalar_lea.sflag [#allocation3], %s460
        %s462 = sand.u32 %s318, 1
        %s463 = smul.addr %s462, 8
        %s464 = scalar_lea.vmem [#allocation2], %s463
        %p465 = pneg %p357
        %p466 = pneg %p354
        %s467 = sand.u32 %s344, 1
        %s468 = scalar_lea.sflag [#allocation5], %s467
        %s469 = sand.u32 %s344, 1
        %s470 = smul.addr %s469, 56
        %s471 = scalar_lea.vmem [#allocation4], %s470
        %p472 = scmp.lt.s32.totalorder %s32, 1
        %s473 = scalar_select %p472, %s32, 1
        %s474 = smul.addr %s473, 7
        %s475 = smul.addr %s474, 8
        %s476 = scalar_lea.vmem %s0, %s475
        %v477 = vld [vmem:[%s476] sm:$0xff]
        %v478 = vld [vmem:[%s476 + $0x8] sm:$0xff]
        %v479 = vld [vmem:[%s476 + $0x10] sm:$0xff]
        %v480 = vld [vmem:[%s476 + $0x18] sm:$0xff]
        %v481 = vld [vmem:[%s476 + $0x20] sm:$0xff]
        %v482 = vld [vmem:[%s476 + $0x28] sm:$0xff]
        %v483 = vld [vmem:[%s476 + $0x30] sm:$0xff]
        %v484 = vld [vmem:[%s1] sm:$0xff]
        %v485 = vld [vmem:[%s1 + $0x8] sm:$0xff]
        %v486 = vld [vmem:[%s1 + $0x10] sm:$0xff]
        %v487 = vld [vmem:[%s1 + $0x18] sm:$0xff]
        %v488 = vld [vmem:[%s1 + $0x20] sm:$0xff]
        %v489 = vld [vmem:[%s1 + $0x28] sm:$0xff]
        %v490 = vld [vmem:[%s1 + $0x30] sm:$0xff]
        %v491 = vld [vmem:[%s1 + $0x38] sm:$0xff]
        %v492 = vld [vmem:[%s1 + $0x40] sm:$0xff]
        %v493 = vld [vmem:[%s1 + $0x48] sm:$0xff]
        %v494 = vld [vmem:[%s1 + $0x50] sm:$0xff]
        %v495 = vld [vmem:[%s1 + $0x58] sm:$0xff]
        %v496 = vld [vmem:[%s1 + $0x60] sm:$0xff]
        %v497 = vld [vmem:[%s1 + $0x68] sm:$0xff]
        %v498 = vld [vmem:[%s1 + $0x70] sm:$0xff]
        %v499 = vld [vmem:[%s1 + $0x78] sm:$0xff]
        %v500 = vld [vmem:[%s1 + $0x80] sm:$0xff]
        %v501 = vld [vmem:[%s1 + $0x88] sm:$0xff]
        %v502 = vld [vmem:[%s1 + $0x90] sm:$0xff]
        %v503 = vld [vmem:[%s1 + $0x98] sm:$0xff]
        %v504 = vld [vmem:[%s1 + $0xa0] sm:$0xff]
        %v505 = vld [vmem:[%s1 + $0xa8] sm:$0xff]
        %v506 = vld [vmem:[%s1 + $0xb0] sm:$0xff]
        %v507 = vld [vmem:[%s1 + $0xb8] sm:$0xff]
        %v508 = vld [vmem:[%s1 + $0xc0] sm:$0xff]
        %v509 = vld [vmem:[%s1 + $0xc8] sm:$0xff]
        %v510 = vld [vmem:[%s1 + $0xd0] sm:$0xff]
        %v511 = vld [vmem:[%s1 + $0xd8] sm:$0xff]
        %v512 = vld [vmem:[%s1 + $0xe0] sm:$0xff]
        %v513 = vld [vmem:[%s1 + $0xe8] sm:$0xff]
        %v514 = vld [vmem:[%s1 + $0xf0] sm:$0xff]
        %v515 = vld [vmem:[%s1 + $0xf8] sm:$0xff]
        %v516 = vld [vmem:[%s1 + $0x100] sm:$0xff]
        %v517 = vld [vmem:[%s1 + $0x108] sm:$0xff]
        %v518 = vld [vmem:[%s1 + $0x110] sm:$0xff]
        %v519 = vld [vmem:[%s1 + $0x118] sm:$0xff]
        %v520 = vld [vmem:[%s1 + $0x120] sm:$0xff]
        %v521 = vld [vmem:[%s1 + $0x128] sm:$0xff]
        %v522 = vld [vmem:[%s1 + $0x130] sm:$0xff]
        %v523 = vld [vmem:[%s1 + $0x138] sm:$0xff]
        %v524 = vld [vmem:[%s1 + $0x140] sm:$0xff]
        %v525 = vld [vmem:[%s1 + $0x148] sm:$0xff]
        %v526 = vld [vmem:[%s1 + $0x150] sm:$0xff]
        %v527 = vld [vmem:[%s1 + $0x158] sm:$0xff]
        %v528 = vld [vmem:[%s1 + $0x160] sm:$0xff]
        %v529 = vld [vmem:[%s1 + $0x168] sm:$0xff]
        %v530 = vld [vmem:[%s1 + $0x170] sm:$0xff]
        %v531 = vld [vmem:[%s1 + $0x178] sm:$0xff]
        %v532 = vld [vmem:[%s1 + $0x180] sm:$0xff]
        %v533 = vld [vmem:[%s1 + $0x188] sm:$0xff]
        %v534 = vld [vmem:[%s1 + $0x190] sm:$0xff]
        %v535 = vld [vmem:[%s1 + $0x198] sm:$0xff]
        %v536 = vld [vmem:[%s1 + $0x1a0] sm:$0xff]
        %v537 = vld [vmem:[%s1 + $0x1a8] sm:$0xff]
        %v538 = vld [vmem:[%s1 + $0x1b0] sm:$0xff]
        %v539 = vld [vmem:[%s1 + $0x1b8] sm:$0xff]
        %v540 = vld [vmem:[%s1 + $0x1c0] sm:$0xff]
        %v541 = vld [vmem:[%s1 + $0x1c8] sm:$0xff]
        %v542 = vld [vmem:[%s1 + $0x1d0] sm:$0xff]
        %v543 = vld [vmem:[%s1 + $0x1d8] sm:$0xff]
        %v544 = vld [vmem:[%s1 + $0x1e0] sm:$0xff]
        %v545 = vld [vmem:[%s1 + $0x1e8] sm:$0xff]
        %v546 = vld [vmem:[%s1 + $0x1f0] sm:$0xff]
        %v547 = vld [vmem:[%s1 + $0x1f8] sm:$0xff]
        %v548 = vld [vmem:[%s1 + $0x200] sm:$0xff]
        %v549 = vld [vmem:[%s1 + $0x208] sm:$0xff]
        %v550 = vld [vmem:[%s1 + $0x210] sm:$0xff]
        %v551 = vld [vmem:[%s1 + $0x218] sm:$0xff]
        %v552 = vld [vmem:[%s1 + $0x220] sm:$0xff]
        %v553 = vld [vmem:[%s1 + $0x228] sm:$0xff]
        %v554 = vld [vmem:[%s1 + $0x230] sm:$0xff]
        %v555 = vld [vmem:[%s1 + $0x238] sm:$0xff]
        %v556 = vld [vmem:[%s1 + $0x240] sm:$0xff]
        %v557 = vld [vmem:[%s1 + $0x248] sm:$0xff]
        %v558 = vld [vmem:[%s1 + $0x250] sm:$0xff]
        %v559 = vld [vmem:[%s1 + $0x258] sm:$0xff]
        %v560 = vld [vmem:[%s1 + $0x260] sm:$0xff]
        %v561 = vld [vmem:[%s1 + $0x268] sm:$0xff]
        %v562 = vld [vmem:[%s1 + $0x270] sm:$0xff]
        %v563 = vld [vmem:[%s1 + $0x278] sm:$0xff]
        %v564 = vld [vmem:[%s1 + $0x280] sm:$0xff]
        %v565 = vld [vmem:[%s1 + $0x288] sm:$0xff]
        %v566 = vld [vmem:[%s1 + $0x290] sm:$0xff]
        %v567 = vld [vmem:[%s1 + $0x298] sm:$0xff]
        %v568 = vld [vmem:[%s1 + $0x2a0] sm:$0xff]
        %v569 = vld [vmem:[%s1 + $0x2a8] sm:$0xff]
        %v570 = vld [vmem:[%s1 + $0x2b0] sm:$0xff]
        %v571 = vld [vmem:[%s1 + $0x2b8] sm:$0xff]
        %v572 = vld [vmem:[%s1 + $0x2c0] sm:$0xff]
        %v573 = vld [vmem:[%s1 + $0x2c8] sm:$0xff]
        %v574 = vld [vmem:[%s1 + $0x2d0] sm:$0xff]
        %v575 = vld [vmem:[%s1 + $0x2d8] sm:$0xff]
        %v576 = vld [vmem:[%s1 + $0x2e0] sm:$0xff]
        %v577 = vld [vmem:[%s1 + $0x2e8] sm:$0xff]
        %v578 = vld [vmem:[%s1 + $0x2f0] sm:$0xff]
        %v579 = vld [vmem:[%s1 + $0x2f8] sm:$0xff]
        %v580 = vld [vmem:[%s1 + $0x300] sm:$0xff]
        %v581 = vld [vmem:[%s1 + $0x308] sm:$0xff]
        %v582 = vld [vmem:[%s1 + $0x310] sm:$0xff]
        %v583 = vld [vmem:[%s1 + $0x318] sm:$0xff]
        %v584 = vld [vmem:[%s1 + $0x320] sm:$0xff]
        %v585 = vld [vmem:[%s1 + $0x328] sm:$0xff]
        %v586 = vld [vmem:[%s1 + $0x330] sm:$0xff]
        %v587 = vld [vmem:[%s1 + $0x338] sm:$0xff]
        %v588 = vld [vmem:[%s1 + $0x340] sm:$0xff]
        %v589 = vld [vmem:[%s1 + $0x348] sm:$0xff]
        %v590 = vld [vmem:[%s1 + $0x350] sm:$0xff]
        %v591 = vld [vmem:[%s1 + $0x358] sm:$0xff]
        %v592 = vld [vmem:[%s1 + $0x360] sm:$0xff]
        %v593 = vld [vmem:[%s1 + $0x368] sm:$0xff]
        %v594 = vld [vmem:[%s1 + $0x370] sm:$0xff]
        %v595 = vld [vmem:[%s1 + $0x378] sm:$0xff]
        %v596 = vld [vmem:[%s1 + $0x380] sm:$0xff]
        %v597 = vld [vmem:[%s1 + $0x388] sm:$0xff]
        %v598 = vld [vmem:[%s1 + $0x390] sm:$0xff]
        %v599 = vld [vmem:[%s1 + $0x398] sm:$0xff]
        %v600 = vld [vmem:[%s1 + $0x3a0] sm:$0xff]
        %v601 = vld [vmem:[%s1 + $0x3a8] sm:$0xff]
        %v602 = vld [vmem:[%s1 + $0x3b0] sm:$0xff]
        %v603 = vld [vmem:[%s1 + $0x3b8] sm:$0xff]
        %v604 = vld [vmem:[%s1 + $0x3c0] sm:$0xff]
        %v605 = vld [vmem:[%s1 + $0x3c8] sm:$0xff]
        %v606 = vld [vmem:[%s1 + $0x3d0] sm:$0xff]
        %v607 = vld [vmem:[%s1 + $0x3d8] sm:$0xff]
        %v608 = vld [vmem:[%s1 + $0x3e0] sm:$0xff]
        %v609 = vld [vmem:[%s1 + $0x3e8] sm:$0xff]
        %v610 = vld [vmem:[%s1 + $0x3f0] sm:$0xff]
        %v611 = vld [vmem:[%s1 + $0x3f8] sm:$0xff]
        %v612 = vld [vmem:[%s1 + $0x400] sm:$0xff]
        %v613 = vld [vmem:[%s1 + $0x408] sm:$0xff]
        %v614 = vld [vmem:[%s1 + $0x410] sm:$0xff]
        %v615 = vld [vmem:[%s1 + $0x418] sm:$0xff]
        %v616 = vld [vmem:[%s1 + $0x420] sm:$0xff]
        %v617 = vld [vmem:[%s1 + $0x428] sm:$0xff]
        %v618 = vld [vmem:[%s1 + $0x430] sm:$0xff]
        %v619 = vld [vmem:[%s1 + $0x438] sm:$0xff]
        %v620 = vld [vmem:[%s1 + $0x440] sm:$0xff]
        %v621 = vld [vmem:[%s1 + $0x448] sm:$0xff]
        %v622 = vld [vmem:[%s1 + $0x450] sm:$0xff]
        %v623 = vld [vmem:[%s1 + $0x458] sm:$0xff]
        %v624 = vld [vmem:[%s1 + $0x460] sm:$0xff]
        %v625 = vld [vmem:[%s1 + $0x468] sm:$0xff]
        %v626 = vld [vmem:[%s1 + $0x470] sm:$0xff]
        %v627 = vld [vmem:[%s1 + $0x478] sm:$0xff]
        %v628 = vld [vmem:[%s1 + $0x480] sm:$0xff]
        %v629 = vld [vmem:[%s1 + $0x488] sm:$0xff]
        %v630 = vld [vmem:[%s1 + $0x490] sm:$0xff]
        %v631 = vld [vmem:[%s1 + $0x498] sm:$0xff]
        %v632 = vld [vmem:[%s1 + $0x4a0] sm:$0xff]
        %v633 = vld [vmem:[%s1 + $0x4a8] sm:$0xff]
        %v634 = vld [vmem:[%s1 + $0x4b0] sm:$0xff]
        %v635 = vld [vmem:[%s1 + $0x4b8] sm:$0xff]
        %v636 = vld [vmem:[%s1 + $0x4c0] sm:$0xff]
        %v637 = vld [vmem:[%s1 + $0x4c8] sm:$0xff]
        %v638 = vld [vmem:[%s1 + $0x4d0] sm:$0xff]
        %v639 = vld [vmem:[%s1 + $0x4d8] sm:$0xff]
        %v640 = vld [vmem:[%s1 + $0x4e0] sm:$0xff]
        %v641 = vld [vmem:[%s1 + $0x4e8] sm:$0xff]
        %v642 = vld [vmem:[%s1 + $0x4f0] sm:$0xff]
        %v643 = vld [vmem:[%s1 + $0x4f8] sm:$0xff]
        %v644 = vld [vmem:[%s1 + $0x500] sm:$0xff]
        %v645 = vld [vmem:[%s1 + $0x508] sm:$0xff]
        %v646 = vld [vmem:[%s1 + $0x510] sm:$0xff]
        %v647 = vld [vmem:[%s1 + $0x518] sm:$0xff]
        %v648 = vld [vmem:[%s1 + $0x520] sm:$0xff]
        %v649 = vld [vmem:[%s1 + $0x528] sm:$0xff]
        %v650 = vld [vmem:[%s1 + $0x530] sm:$0xff]
        %v651 = vld [vmem:[%s1 + $0x538] sm:$0xff]
        %v652 = vld [vmem:[%s1 + $0x540] sm:$0xff]
        %v653 = vld [vmem:[%s1 + $0x548] sm:$0xff]
        %v654 = vld [vmem:[%s1 + $0x550] sm:$0xff]
        %v655 = vld [vmem:[%s1 + $0x558] sm:$0xff]
        %v656 = vld [vmem:[%s1 + $0x560] sm:$0xff]
        %v657 = vld [vmem:[%s1 + $0x568] sm:$0xff]
        %v658 = vld [vmem:[%s1 + $0x570] sm:$0xff]
        %v659 = vld [vmem:[%s1 + $0x578] sm:$0xff]
        %v660 = vld [vmem:[%s1 + $0x580] sm:$0xff]
        %v661 = vld [vmem:[%s1 + $0x588] sm:$0xff]
        %v662 = vld [vmem:[%s1 + $0x590] sm:$0xff]
        %v663 = vld [vmem:[%s1 + $0x598] sm:$0xff]
        %v664 = vld [vmem:[%s1 + $0x5a0] sm:$0xff]
        %v665 = vld [vmem:[%s1 + $0x5a8] sm:$0xff]
        %v666 = vld [vmem:[%s1 + $0x5b0] sm:$0xff]
        %v667 = vld [vmem:[%s1 + $0x5b8] sm:$0xff]
        %v668 = vld [vmem:[%s1 + $0x5c0] sm:$0xff]
        %v669 = vld [vmem:[%s1 + $0x5c8] sm:$0xff]
        %v670 = vld [vmem:[%s1 + $0x5d0] sm:$0xff]
        %v671 = vld [vmem:[%s1 + $0x5d8] sm:$0xff]
        %v672 = vld [vmem:[%s1 + $0x5e0] sm:$0xff]
        %v673 = vld [vmem:[%s1 + $0x5e8] sm:$0xff]
        %v674 = vld [vmem:[%s1 + $0x5f0] sm:$0xff]
        %v675 = vld [vmem:[%s1 + $0x5f8] sm:$0xff]
        %v676 = vld [vmem:[%s1 + $0x600] sm:$0xff]
        %v677 = vld [vmem:[%s1 + $0x608] sm:$0xff]
        %v678 = vld [vmem:[%s1 + $0x610] sm:$0xff]
        %v679 = vld [vmem:[%s1 + $0x618] sm:$0xff]
        %v680 = vld [vmem:[%s2] sm:$0x3]
        %v682 = vperm.slane %v680, 0
        %v683 = vperm.slane %v680, 1
        %vm686 = vcmask 130048
        %v688 = vsel %vm686, %v483, 0
        %690 = vmatpush.msra.mxu0 %v514
        %691 = vmatpush.msra.mxu0 %v512
        %692 = vmatpush.msra.mxu0 %v510
        %693 = vmatpush.msra.mxu0 %v508
        %694 = vmatpush.msra.mxu0 %v506
        %695 = vmatpush.msra.mxu0 %v504
        %696 = vmatpush.msra.mxu0 %v502
        %697 = vmatpush.msra.mxu0 %v500
        %698 = vmatpush.msra.mxu0 %v498
        %699 = vmatpush.msra.mxu0 %v496
        %700 = vmatpush.msra.mxu0 %v494
        %701 = vmatpush.msra.mxu0 %v492
        %702 = vmatpush.msra.mxu0 %v490
        %703 = vmatpush.msra.mxu0 %v488
        %704 = vmatpush.msra.mxu0 %v486
        %705 = vmatpush.msra.mxu0 %v484
        %706 = vmatmul.f32.gmra.mxu0 %v477
        %v707 = vpop.f32.mrf.mxu0
        %v708 = vadd.f32 %v682, %v707
        %709 = vdwg.mxu0
        %710 = vmatpush.msra.mxu0 %v546
        %711 = vmatpush.msra.mxu0 %v544
        %712 = vmatpush.msra.mxu0 %v542
        %713 = vmatpush.msra.mxu0 %v540
        %714 = vmatpush.msra.mxu0 %v538
        %715 = vmatpush.msra.mxu0 %v536
        %716 = vmatpush.msra.mxu0 %v534
        %717 = vmatpush.msra.mxu0 %v532
        %718 = vmatpush.msra.mxu0 %v530
        %719 = vmatpush.msra.mxu0 %v528
        %720 = vmatpush.msra.mxu0 %v526
        %721 = vmatpush.msra.mxu0 %v524
        %722 = vmatpush.msra.mxu0 %v522
        %723 = vmatpush.msra.mxu0 %v520
        %724 = vmatpush.msra.mxu0 %v518
        %725 = vmatpush.msra.mxu0 %v516
        %726 = vmatmul.f32.gmra.mxu0 %v478
        %v727 = vpop.f32.mrf.mxu0
        %v728 = vadd.f32 %v708, %v727
        %729 = vdwg.mxu0
        %730 = vmatpush.msra.mxu0 %v578
        %731 = vmatpush.msra.mxu0 %v576
        %732 = vmatpush.msra.mxu0 %v574
        %733 = vmatpush.msra.mxu0 %v572
        %734 = vmatpush.msra.mxu0 %v570
        %735 = vmatpush.msra.mxu0 %v568
        %736 = vmatpush.msra.mxu0 %v566
        %737 = vmatpush.msra.mxu0 %v564
        %738 = vmatpush.msra.mxu0 %v562
        %739 = vmatpush.msra.mxu0 %v560
        %740 = vmatpush.msra.mxu0 %v558
        %741 = vmatpush.msra.mxu0 %v556
        %742 = vmatpush.msra.mxu0 %v554
        %743 = vmatpush.msra.mxu0 %v552
        %744 = vmatpush.msra.mxu0 %v550
        %745 = vmatpush.msra.mxu0 %v548
        %746 = vmatmul.f32.gmra.mxu0 %v479
        %v747 = vpop.f32.mrf.mxu0
        %v748 = vadd.f32 %v728, %v747
        %749 = vdwg.mxu0
        %750 = vmatpush.msra.mxu0 %v610
        %751 = vmatpush.msra.mxu0 %v608
        %752 = vmatpush.msra.mxu0 %v606
        %753 = vmatpush.msra.mxu0 %v604
        %754 = vmatpush.msra.mxu0 %v602
        %755 = vmatpush.msra.mxu0 %v600
        %756 = vmatpush.msra.mxu0 %v598
        %757 = vmatpush.msra.mxu0 %v596
        %758 = vmatpush.msra.mxu0 %v594
        %759 = vmatpush.msra.mxu0 %v592
        %760 = vmatpush.msra.mxu0 %v590
        %761 = vmatpush.msra.mxu0 %v588
        %762 = vmatpush.msra.mxu0 %v586
        %763 = vmatpush.msra.mxu0 %v584
        %764 = vmatpush.msra.mxu0 %v582
        %765 = vmatpush.msra.mxu0 %v580
        %766 = vmatmul.f32.gmra.mxu0 %v480
        %v767 = vpop.f32.mrf.mxu0
        %v768 = vadd.f32 %v748, %v767
        %769 = vdwg.mxu0
        %770 = vmatpush.msra.mxu0 %v642
        %771 = vmatpush.msra.mxu0 %v640
        %772 = vmatpush.msra.mxu0 %v638
        %773 = vmatpush.msra.mxu0 %v636
        %774 = vmatpush.msra.mxu0 %v634
        %775 = vmatpush.msra.mxu0 %v632
        %776 = vmatpush.msra.mxu0 %v630
        %777 = vmatpush.msra.mxu0 %v628
        %778 = vmatpush.msra.mxu0 %v626
        %779 = vmatpush.msra.mxu0 %v624
        %780 = vmatpush.msra.mxu0 %v622
        %781 = vmatpush.msra.mxu0 %v620
        %782 = vmatpush.msra.mxu0 %v618
        %783 = vmatpush.msra.mxu0 %v616
        %784 = vmatpush.msra.mxu0 %v614
        %785 = vmatpush.msra.mxu0 %v612
        %786 = vmatmul.f32.gmra.mxu0 %v481
        %v787 = vpop.f32.mrf.mxu0
        %v788 = vadd.f32 %v768, %v787
        %789 = vdwg.mxu0
        %790 = vmatpush.msra.mxu0 %v674
        %791 = vmatpush.msra.mxu0 %v672
        %792 = vmatpush.msra.mxu0 %v670
        %793 = vmatpush.msra.mxu0 %v668
        %794 = vmatpush.msra.mxu0 %v666
        %795 = vmatpush.msra.mxu0 %v664
        %796 = vmatpush.msra.mxu0 %v662
        %797 = vmatpush.msra.mxu0 %v660
        %798 = vmatpush.msra.mxu0 %v658
        %799 = vmatpush.msra.mxu0 %v656
        %800 = vmatpush.msra.mxu0 %v654
        %801 = vmatpush.msra.mxu0 %v652
        %802 = vmatpush.msra.mxu0 %v650
        %803 = vmatpush.msra.mxu0 %v648
        %804 = vmatpush.msra.mxu0 %v646
        %805 = vmatpush.msra.mxu0 %v644
        %806 = vmatmul.f32.gmra.mxu0 %v482
        %v807 = vpop.f32.mrf.mxu0
        %v808 = vadd.f32 %v788, %v807
        %809 = vdwg.mxu0
        %810 = vmatpush.msra.mxu0 0.0
        %811 = vmatpush.msra.mxu0 0.0
        %812 = vmatpush.msra.mxu0 0.0
        %813 = vmatpush.msra.mxu0 0.0
        %814 = vmatpush.msra.mxu0 0.0
        %815 = vmatpush.msra.mxu0 0.0
        %816 = vmatpush.msra.mxu0 0.0
        %817 = vmatpush.msra.mxu0 0.0
        %818 = vmatpush.msra.mxu0 0.0
        %819 = vmatpush.msra.mxu0 0.0
        %820 = vmatpush.msra.mxu0 0.0
        %821 = vmatpush.msra.mxu0 0.0
        %822 = vmatpush.msra.mxu0 0.0
        %823 = vmatpush.msra.mxu0 0.0
        %824 = vmatpush.msra.mxu0 %v678
        %825 = vmatpush.msra.mxu0 %v676
        %826 = vmatmul.f32.gmra.mxu0 %v688
        %v827 = vpop.f32.mrf.mxu0
        %v828 = vadd.f32 %v808, %v827
        %829 = vdwg.mxu0
        %830 = vmatpush.msra.mxu0 %v515
        %831 = vmatpush.msra.mxu0 %v513
        %832 = vmatpush.msra.mxu0 %v511
        %833 = vmatpush.msra.mxu0 %v509
        %834 = vmatpush.msra.mxu0 %v507
        %835 = vmatpush.msra.mxu0 %v505
        %836 = vmatpush.msra.mxu0 %v503
        %837 = vmatpush.msra.mxu0 %v501
        %838 = vmatpush.msra.mxu0 %v499
        %839 = vmatpush.msra.mxu0 %v497
        %840 = vmatpush.msra.mxu0 %v495
        %841 = vmatpush.msra.mxu0 %v493
        %842 = vmatpush.msra.mxu0 %v491
        %843 = vmatpush.msra.mxu0 %v489
        %844 = vmatpush.msra.mxu0 %v487
        %845 = vmatpush.msra.mxu0 %v485
        %846 = vmatmul.f32.gmra.mxu0 %v477
        %v847 = vpop.f32.mrf.mxu0
        %v848 = vadd.f32 %v683, %v847
        %849 = vdwg.mxu0
        %850 = vmatpush.msra.mxu0 %v547
        %851 = vmatpush.msra.mxu0 %v545
        %852 = vmatpush.msra.mxu0 %v543
        %853 = vmatpush.msra.mxu0 %v541
        %854 = vmatpush.msra.mxu0 %v539
        %855 = vmatpush.msra.mxu0 %v537
        %856 = vmatpush.msra.mxu0 %v535
        %857 = vmatpush.msra.mxu0 %v533
        %858 = vmatpush.msra.mxu0 %v531
        %859 = vmatpush.msra.mxu0 %v529
        %860 = vmatpush.msra.mxu0 %v527
        %861 = vmatpush.msra.mxu0 %v525
        %862 = vmatpush.msra.mxu0 %v523
        %863 = vmatpush.msra.mxu0 %v521
        %864 = vmatpush.msra.mxu0 %v519
        %865 = vmatpush.msra.mxu0 %v517
        %866 = vmatmul.f32.gmra.mxu0 %v478
        %v867 = vpop.f32.mrf.mxu0
        %v868 = vadd.f32 %v848, %v867
        %869 = vdwg.mxu0
        %870 = vmatpush.msra.mxu0 %v579
        %871 = vmatpush.msra.mxu0 %v577
        %872 = vmatpush.msra.mxu0 %v575
        %873 = vmatpush.msra.mxu0 %v573
        %874 = vmatpush.msra.mxu0 %v571
        %875 = vmatpush.msra.mxu0 %v569
        %876 = vmatpush.msra.mxu0 %v567
        %877 = vmatpush.msra.mxu0 %v565
        %878 = vmatpush.msra.mxu0 %v563
        %879 = vmatpush.msra.mxu0 %v561
        %880 = vmatpush.msra.mxu0 %v559
        %881 = vmatpush.msra.mxu0 %v557
        %882 = vmatpush.msra.mxu0 %v555
        %883 = vmatpush.msra.mxu0 %v553
        %884 = vmatpush.msra.mxu0 %v551
        %885 = vmatpush.msra.mxu0 %v549
        %886 = vmatmul.f32.gmra.mxu0 %v479
        %v887 = vpop.f32.mrf.mxu0
        %v888 = vadd.f32 %v868, %v887
        %889 = vdwg.mxu0
        %890 = vmatpush.msra.mxu0 %v611
        %891 = vmatpush.msra.mxu0 %v609
        %892 = vmatpush.msra.mxu0 %v607
        %893 = vmatpush.msra.mxu0 %v605
        %894 = vmatpush.msra.mxu0 %v603
        %895 = vmatpush.msra.mxu0 %v601
        %896 = vmatpush.msra.mxu0 %v599
        %897 = vmatpush.msra.mxu0 %v597
        %898 = vmatpush.msra.mxu0 %v595
        %899 = vmatpush.msra.mxu0 %v593
        %900 = vmatpush.msra.mxu0 %v591
        %901 = vmatpush.msra.mxu0 %v589
        %902 = vmatpush.msra.mxu0 %v587
        %903 = vmatpush.msra.mxu0 %v585
        %904 = vmatpush.msra.mxu0 %v583
        %905 = vmatpush.msra.mxu0 %v581
        %906 = vmatmul.f32.gmra.mxu0 %v480
        %v907 = vpop.f32.mrf.mxu0
        %v908 = vadd.f32 %v888, %v907
        %909 = vdwg.mxu0
        %910 = vmatpush.msra.mxu0 %v643
        %911 = vmatpush.msra.mxu0 %v641
        %912 = vmatpush.msra.mxu0 %v639
        %913 = vmatpush.msra.mxu0 %v637
        %914 = vmatpush.msra.mxu0 %v635
        %915 = vmatpush.msra.mxu0 %v633
        %916 = vmatpush.msra.mxu0 %v631
        %917 = vmatpush.msra.mxu0 %v629
        %918 = vmatpush.msra.mxu0 %v627
        %919 = vmatpush.msra.mxu0 %v625
        %920 = vmatpush.msra.mxu0 %v623
        %921 = vmatpush.msra.mxu0 %v621
        %922 = vmatpush.msra.mxu0 %v619
        %923 = vmatpush.msra.mxu0 %v617
        %924 = vmatpush.msra.mxu0 %v615
        %925 = vmatpush.msra.mxu0 %v613
        %926 = vmatmul.f32.gmra.mxu0 %v481
        %v927 = vpop.f32.mrf.mxu0
        %v928 = vadd.f32 %v908, %v927
        %929 = vdwg.mxu0
        %930 = vmatpush.msra.mxu0 %v675
        %931 = vmatpush.msra.mxu0 %v673
        %932 = vmatpush.msra.mxu0 %v671
        %933 = vmatpush.msra.mxu0 %v669
        %934 = vmatpush.msra.mxu0 %v667
        %935 = vmatpush.msra.mxu0 %v665
        %936 = vmatpush.msra.mxu0 %v663
        %937 = vmatpush.msra.mxu0 %v661
        %938 = vmatpush.msra.mxu0 %v659
        %939 = vmatpush.msra.mxu0 %v657
        %940 = vmatpush.msra.mxu0 %v655
        %941 = vmatpush.msra.mxu0 %v653
        %942 = vmatpush.msra.mxu0 %v651
        %943 = vmatpush.msra.mxu0 %v649
        %944 = vmatpush.msra.mxu0 %v647
        %945 = vmatpush.msra.mxu0 %v645
        %946 = vmatmul.f32.gmra.mxu0 %v482
        %v947 = vpop.f32.mrf.mxu0
        %v948 = vadd.f32 %v928, %v947
        %949 = vdwg.mxu0
        %950 = vmatpush.msra.mxu0 0.0
        %951 = vmatpush.msra.mxu0 0.0
        %952 = vmatpush.msra.mxu0 0.0
        %953 = vmatpush.msra.mxu0 0.0
        %954 = vmatpush.msra.mxu0 0.0
        %955 = vmatpush.msra.mxu0 0.0
        %956 = vmatpush.msra.mxu0 0.0
        %957 = vmatpush.msra.mxu0 0.0
        %958 = vmatpush.msra.mxu0 0.0
        %959 = vmatpush.msra.mxu0 0.0
        %960 = vmatpush.msra.mxu0 0.0
        %961 = vmatpush.msra.mxu0 0.0
        %962 = vmatpush.msra.mxu0 0.0
        %963 = vmatpush.msra.mxu0 0.0
        %964 = vmatpush.msra.mxu0 %v679
        %965 = vmatpush.msra.mxu0 %v677
        %966 = vmatmul.f32.gmra.mxu0 %v688
        %v967 = vpop.f32.mrf.mxu0
        %v968 = vadd.f32 %v948, %v967
        %969 = vdwg.mxu0
        %v970 = vmax.f32 %v828, 0.0
        %v971 = vmax.f32 %v968, 0.0
        %v972 = vld [vmem:[%s3] sm:$0xff]
        %v973 = vld [vmem:[%s3 + $0x8] sm:$0xff]
        %v974 = vld [vmem:[%s3 + $0x10] sm:$0xff]
        %v975 = vld [vmem:[%s3 + $0x18] sm:$0xff]
        %v976 = vld [vmem:[%s3 + $0x20] sm:$0xff]
        %v977 = vld [vmem:[%s3 + $0x28] sm:$0xff]
        %v978 = vld [vmem:[%s3 + $0x30] sm:$0xff]
        %v979 = vld [vmem:[%s3 + $0x38] sm:$0xff]
        %v980 = vld [vmem:[%s3 + $0x40] sm:$0xff]
        %v981 = vld [vmem:[%s3 + $0x48] sm:$0xff]
        %v982 = vld [vmem:[%s3 + $0x50] sm:$0xff]
        %v983 = vld [vmem:[%s3 + $0x58] sm:$0xff]
        %v984 = vld [vmem:[%s3 + $0x60] sm:$0xff]
        %v985 = vld [vmem:[%s3 + $0x68] sm:$0xff]
        %v986 = vld [vmem:[%s3 + $0x70] sm:$0xff]
        %v987 = vld [vmem:[%s3 + $0x78] sm:$0xff]
        %v988 = vld [vmem:[%s3 + $0x80] sm:$0xff]
        %v989 = vld [vmem:[%s3 + $0x88] sm:$0xff]
        %v990 = vld [vmem:[%s3 + $0x90] sm:$0xff]
        %v991 = vld [vmem:[%s3 + $0x98] sm:$0xff]
        %v992 = vld [vmem:[%s3 + $0xa0] sm:$0xff]
        %v993 = vld [vmem:[%s3 + $0xa8] sm:$0xff]
        %v994 = vld [vmem:[%s3 + $0xb0] sm:$0xff]
        %v995 = vld [vmem:[%s3 + $0xb8] sm:$0xff]
        %v996 = vld [vmem:[%s3 + $0xc0] sm:$0xff]
        %v997 = vld [vmem:[%s3 + $0xc8] sm:$0xff]
        %v998 = vld [vmem:[%s3 + $0xd0] sm:$0xff]
        %v999 = vld [vmem:[%s3 + $0xd8] sm:$0xff]
        %v1000 = vld [vmem:[%s3 + $0xe0] sm:$0xff]
        %v1001 = vld [vmem:[%s3 + $0xe8] sm:$0xff]
        %v1002 = vld [vmem:[%s3 + $0xf0] sm:$0xff]
        %v1003 = vld [vmem:[%s3 + $0xf8] sm:$0xff]
        %v1004 = vld [vmem:[%s4] sm:$0x1]
        %v1006 = vperm.slane %v1004, 0
        %1008 = vmatpush.msra.mxu0 %v987
        %1009 = vmatpush.msra.mxu0 %v986
        %1010 = vmatpush.msra.mxu0 %v985
        %1011 = vmatpush.msra.mxu0 %v984
        %1012 = vmatpush.msra.mxu0 %v983
        %1013 = vmatpush.msra.mxu0 %v982
        %1014 = vmatpush.msra.mxu0 %v981
        %1015 = vmatpush.msra.mxu0 %v980
        %1016 = vmatpush.msra.mxu0 %v979
        %1017 = vmatpush.msra.mxu0 %v978
        %1018 = vmatpush.msra.mxu0 %v977
        %1019 = vmatpush.msra.mxu0 %v976
        %1020 = vmatpush.msra.mxu0 %v975
        %1021 = vmatpush.msra.mxu0 %v974
        %1022 = vmatpush.msra.mxu0 %v973
        %1023 = vmatpush.msra.mxu0 %v972
        %1024 = vmatmul.f32.gmra.mxu0 %v970
        %v1025 = vpop.f32.mrf.mxu0
        %v1026 = vadd.f32 %v1006, %v1025
        %1027 = vdwg.mxu0
        %1028 = vmatpush.msra.mxu0 %v1003
        %1029 = vmatpush.msra.mxu0 %v1002
        %1030 = vmatpush.msra.mxu0 %v1001
        %1031 = vmatpush.msra.mxu0 %v1000
        %1032 = vmatpush.msra.mxu0 %v999
        %1033 = vmatpush.msra.mxu0 %v998
        %1034 = vmatpush.msra.mxu0 %v997
        %1035 = vmatpush.msra.mxu0 %v996
        %1036 = vmatpush.msra.mxu0 %v995
        %1037 = vmatpush.msra.mxu0 %v994
        %1038 = vmatpush.msra.mxu0 %v993
        %1039 = vmatpush.msra.mxu0 %v992
        %1040 = vmatpush.msra.mxu0 %v991
        %1041 = vmatpush.msra.mxu0 %v990
        %1042 = vmatpush.msra.mxu0 %v989
        %1043 = vmatpush.msra.mxu0 %v988
        %1044 = vmatmul.f32.gmra.mxu0 %v971
        %v1045 = vpop.f32.mrf.mxu0
        %v1046 = vadd.f32 %v1026, %v1045
        %1047 = vdwg.mxu0
        %v1048 = vmax.f32 %v1046, 0.0
        %v1049 = vld [vmem:[%s5] sm:$0xff]
        %v1050 = vld [vmem:[%s5 + $0x8] sm:$0xff]
        %v1051 = vld [vmem:[%s5 + $0x10] sm:$0xff]
        %v1052 = vld [vmem:[%s5 + $0x18] sm:$0xff]
        %v1053 = vld [vmem:[%s5 + $0x20] sm:$0xff]
        %v1054 = vld [vmem:[%s5 + $0x28] sm:$0xff]
        %v1055 = vld [vmem:[%s5 + $0x30] sm:$0xff]
        %v1056 = vld [vmem:[%s5 + $0x38] sm:$0xff]
        %v1057 = vld [vmem:[%s5 + $0x40] sm:$0xff]
        %v1058 = vld [vmem:[%s5 + $0x48] sm:$0xff]
        %v1059 = vld [vmem:[%s5 + $0x50] sm:$0xff]
        %v1060 = vld [vmem:[%s5 + $0x58] sm:$0xff]
        %v1061 = vld [vmem:[%s5 + $0x60] sm:$0xff]
        %v1062 = vld [vmem:[%s5 + $0x68] sm:$0xff]
        %v1063 = vld [vmem:[%s5 + $0x70] sm:$0xff]
        %v1064 = vld [vmem:[%s5 + $0x78] sm:$0xff]
        %v1065 = vld [vmem:[%s6] sm:$0x1]
        %v1067 = vperm.slane %v1065, 0
        %1069 = vmatpush.msra.mxu0 %v1064
        %1070 = vmatpush.msra.mxu0 %v1063
        %1071 = vmatpush.msra.mxu0 %v1062
        %1072 = vmatpush.msra.mxu0 %v1061
        %1073 = vmatpush.msra.mxu0 %v1060
        %1074 = vmatpush.msra.mxu0 %v1059
        %1075 = vmatpush.msra.mxu0 %v1058
        %1076 = vmatpush.msra.mxu0 %v1057
        %1077 = vmatpush.msra.mxu0 %v1056
        %1078 = vmatpush.msra.mxu0 %v1055
        %1079 = vmatpush.msra.mxu0 %v1054
        %1080 = vmatpush.msra.mxu0 %v1053
        %1081 = vmatpush.msra.mxu0 %v1052
        %1082 = vmatpush.msra.mxu0 %v1051
        %1083 = vmatpush.msra.mxu0 %v1050
        %1084 = vmatpush.msra.mxu0 %v1049
        %1085 = vmatmul.f32.gmra.mxu0 %v1048
        %v1086 = vpop.f32.mrf.mxu0
        %v1087 = vadd.f32 %v1067, %v1086
        %1088 = vdwg.mxu0
        %v1089 = vmax.f32 %v1087, 0.0
        %1090 = vst [vmem:[%s464] sm:$0xff] %v1089
        %v1091 = vld [vmem:[%s7] sm:$0xff]
        %v1092 = vld [vmem:[%s7 + $0x8] sm:$0xff]
        %v1093 = vld [vmem:[%s7 + $0x10] sm:$0xff]
        %v1094 = vld [vmem:[%s7 + $0x18] sm:$0xff]
        %v1095 = vld [vmem:[%s7 + $0x20] sm:$0xff]
        %v1096 = vld [vmem:[%s7 + $0x28] sm:$0xff]
        %v1097 = vld [vmem:[%s7 + $0x30] sm:$0xff]
        %v1098 = vld [vmem:[%s7 + $0x38] sm:$0xff]
        %v1099 = vld [vmem:[%s7 + $0x40] sm:$0xff]
        %v1100 = vld [vmem:[%s7 + $0x48] sm:$0xff]
        %v1101 = vld [vmem:[%s7 + $0x50] sm:$0xff]
        %v1102 = vld [vmem:[%s7 + $0x58] sm:$0xff]
        %v1103 = vld [vmem:[%s7 + $0x60] sm:$0xff]
        %v1104 = vld [vmem:[%s7 + $0x68] sm:$0xff]
        %v1105 = vld [vmem:[%s7 + $0x70] sm:$0xff]
        %v1106 = vld [vmem:[%s7 + $0x78] sm:$0xff]
        %v1107 = vld [vmem:[%s8] sm:$0x1]
        %v1109 = vperm.slane %v1107, 0
        %1111 = vmatpush.msra.mxu0 %v1106
        %1112 = vmatpush.msra.mxu0 %v1105
        %1113 = vmatpush.msra.mxu0 %v1104
        %1114 = vmatpush.msra.mxu0 %v1103
        %1115 = vmatpush.msra.mxu0 %v1102
        %1116 = vmatpush.msra.mxu0 %v1101
        %1117 = vmatpush.msra.mxu0 %v1100
        %1118 = vmatpush.msra.mxu0 %v1099
        %1119 = vmatpush.msra.mxu0 %v1098
        %1120 = vmatpush.msra.mxu0 %v1097
        %1121 = vmatpush.msra.mxu0 %v1096
        %1122 = vmatpush.msra.mxu0 %v1095
        %1123 = vmatpush.msra.mxu0 %v1094
        %1124 = vmatpush.msra.mxu0 %v1093
        %1125 = vmatpush.msra.mxu0 %v1092
        %1126 = vmatpush.msra.mxu0 %v1091
        %1127 = vmatmul.f32.gmra.mxu0 %v1089
        %v1128 = vpop.f32.mrf.mxu0
        %v1129 = vadd.f32 %v1109, %v1128
        %1130 = vdwg.mxu0
        %v1131 = vmax.f32 %v1129, 0.0
        %v1132 = vld [vmem:[%s9] sm:$0xff]
        %v1133 = vld [vmem:[%s9 + $0x8] sm:$0xff]
        %v1134 = vld [vmem:[%s9 + $0x10] sm:$0xff]
        %v1135 = vld [vmem:[%s9 + $0x18] sm:$0xff]
        %v1136 = vld [vmem:[%s9 + $0x20] sm:$0xff]
        %v1137 = vld [vmem:[%s9 + $0x28] sm:$0xff]
        %v1138 = vld [vmem:[%s9 + $0x30] sm:$0xff]
        %v1139 = vld [vmem:[%s9 + $0x38] sm:$0xff]
        %v1140 = vld [vmem:[%s9 + $0x40] sm:$0xff]
        %v1141 = vld [vmem:[%s9 + $0x48] sm:$0xff]
        %v1142 = vld [vmem:[%s9 + $0x50] sm:$0xff]
        %v1143 = vld [vmem:[%s9 + $0x58] sm:$0xff]
        %v1144 = vld [vmem:[%s9 + $0x60] sm:$0xff]
        %v1145 = vld [vmem:[%s9 + $0x68] sm:$0xff]
        %v1146 = vld [vmem:[%s9 + $0x70] sm:$0xff]
        %v1147 = vld [vmem:[%s9 + $0x78] sm:$0xff]
        %v1148 = vld [vmem:[%s9 + $0x80] sm:$0xff]
        %v1149 = vld [vmem:[%s9 + $0x88] sm:$0xff]
        %v1150 = vld [vmem:[%s9 + $0x90] sm:$0xff]
        %v1151 = vld [vmem:[%s9 + $0x98] sm:$0xff]
        %v1152 = vld [vmem:[%s9 + $0xa0] sm:$0xff]
        %v1153 = vld [vmem:[%s9 + $0xa8] sm:$0xff]
        %v1154 = vld [vmem:[%s9 + $0xb0] sm:$0xff]
        %v1155 = vld [vmem:[%s9 + $0xb8] sm:$0xff]
        %v1156 = vld [vmem:[%s9 + $0xc0] sm:$0xff]
        %v1157 = vld [vmem:[%s9 + $0xc8] sm:$0xff]
        %v1158 = vld [vmem:[%s9 + $0xd0] sm:$0xff]
        %v1159 = vld [vmem:[%s9 + $0xd8] sm:$0xff]
        %v1160 = vld [vmem:[%s9 + $0xe0] sm:$0xff]
        %v1161 = vld [vmem:[%s9 + $0xe8] sm:$0xff]
        %v1162 = vld [vmem:[%s9 + $0xf0] sm:$0xff]
        %v1163 = vld [vmem:[%s9 + $0xf8] sm:$0xff]
        %v1164 = vld [vmem:[%s10] sm:$0x3]
        %v1166 = vperm.slane %v1164, 0
        %v1167 = vperm.slane %v1164, 1
        %1170 = vmatpush.msra.mxu0 %v1162
        %1171 = vmatpush.msra.mxu0 %v1160
        %1172 = vmatpush.msra.mxu0 %v1158
        %1173 = vmatpush.msra.mxu0 %v1156
        %1174 = vmatpush.msra.mxu0 %v1154
        %1175 = vmatpush.msra.mxu0 %v1152
        %1176 = vmatpush.msra.mxu0 %v1150
        %1177 = vmatpush.msra.mxu0 %v1148
        %1178 = vmatpush.msra.mxu0 %v1146
        %1179 = vmatpush.msra.mxu0 %v1144
        %1180 = vmatpush.msra.mxu0 %v1142
        %1181 = vmatpush.msra.mxu0 %v1140
        %1182 = vmatpush.msra.mxu0 %v1138
        %1183 = vmatpush.msra.mxu0 %v1136
        %1184 = vmatpush.msra.mxu0 %v1134
        %1185 = vmatpush.msra.mxu0 %v1132
        %1186 = vmatmul.f32.gmra.mxu0 %v1131
        %v1187 = vpop.f32.mrf.mxu0
        %v1188 = vadd.f32 %v1166, %v1187
        %1189 = vdwg.mxu0
        %1190 = vmatpush.msra.mxu0 %v1163
        %1191 = vmatpush.msra.mxu0 %v1161
        %1192 = vmatpush.msra.mxu0 %v1159
        %1193 = vmatpush.msra.mxu0 %v1157
        %1194 = vmatpush.msra.mxu0 %v1155
        %1195 = vmatpush.msra.mxu0 %v1153
        %1196 = vmatpush.msra.mxu0 %v1151
        %1197 = vmatpush.msra.mxu0 %v1149
        %1198 = vmatpush.msra.mxu0 %v1147
        %1199 = vmatpush.msra.mxu0 %v1145
        %1200 = vmatpush.msra.mxu0 %v1143
        %1201 = vmatpush.msra.mxu0 %v1141
        %1202 = vmatpush.msra.mxu0 %v1139
        %1203 = vmatpush.msra.mxu0 %v1137
        %1204 = vmatpush.msra.mxu0 %v1135
        %1205 = vmatpush.msra.mxu0 %v1133
        %1206 = vmatmul.f32.gmra.mxu0 %v1131
        %v1207 = vpop.f32.mrf.mxu0
        %v1208 = vadd.f32 %v1167, %v1207
        %1209 = vdwg.mxu0
        %v1210 = vmax.f32 %v1188, 0.0
        %v1211 = vmax.f32 %v1208, 0.0
        %v1212 = vld [vmem:[%s11] sm:$0xff]
        %v1213 = vld [vmem:[%s11 + $0x8] sm:$0xff]
        %v1214 = vld [vmem:[%s11 + $0x10] sm:$0xff]
        %v1215 = vld [vmem:[%s11 + $0x18] sm:$0xff]
        %v1216 = vld [vmem:[%s11 + $0x20] sm:$0xff]
        %v1217 = vld [vmem:[%s11 + $0x28] sm:$0xff]
        %v1218 = vld [vmem:[%s11 + $0x30] sm:$0xff]
        %v1219 = vld [vmem:[%s11 + $0x38] sm:$0xff]
        %v1220 = vld [vmem:[%s11 + $0x40] sm:$0xff]
        %v1221 = vld [vmem:[%s11 + $0x48] sm:$0xff]
        %v1222 = vld [vmem:[%s11 + $0x50] sm:$0xff]
        %v1223 = vld [vmem:[%s11 + $0x58] sm:$0xff]
        %v1224 = vld [vmem:[%s11 + $0x60] sm:$0xff]
        %v1225 = vld [vmem:[%s11 + $0x68] sm:$0xff]
        %v1226 = vld [vmem:[%s11 + $0x70] sm:$0xff]
        %v1227 = vld [vmem:[%s11 + $0x78] sm:$0xff]
        %v1228 = vld [vmem:[%s11 + $0x80] sm:$0xff]
        %v1229 = vld [vmem:[%s11 + $0x88] sm:$0xff]
        %v1230 = vld [vmem:[%s11 + $0x90] sm:$0xff]
        %v1231 = vld [vmem:[%s11 + $0x98] sm:$0xff]
        %v1232 = vld [vmem:[%s11 + $0xa0] sm:$0xff]
        %v1233 = vld [vmem:[%s11 + $0xa8] sm:$0xff]
        %v1234 = vld [vmem:[%s11 + $0xb0] sm:$0xff]
        %v1235 = vld [vmem:[%s11 + $0xb8] sm:$0xff]
        %v1236 = vld [vmem:[%s11 + $0xc0] sm:$0xff]
        %v1237 = vld [vmem:[%s11 + $0xc8] sm:$0xff]
        %v1238 = vld [vmem:[%s11 + $0xd0] sm:$0xff]
        %v1239 = vld [vmem:[%s11 + $0xd8] sm:$0xff]
        %v1240 = vld [vmem:[%s11 + $0xe0] sm:$0xff]
        %v1241 = vld [vmem:[%s11 + $0xe8] sm:$0xff]
        %v1242 = vld [vmem:[%s11 + $0xf0] sm:$0xff]
        %v1243 = vld [vmem:[%s11 + $0xf8] sm:$0xff]
        %v1244 = vld [vmem:[%s11 + $0x100] sm:$0xff]
        %v1245 = vld [vmem:[%s11 + $0x108] sm:$0xff]
        %v1246 = vld [vmem:[%s11 + $0x110] sm:$0xff]
        %v1247 = vld [vmem:[%s11 + $0x118] sm:$0xff]
        %v1248 = vld [vmem:[%s11 + $0x120] sm:$0xff]
        %v1249 = vld [vmem:[%s11 + $0x128] sm:$0xff]
        %v1250 = vld [vmem:[%s11 + $0x130] sm:$0xff]
        %v1251 = vld [vmem:[%s11 + $0x138] sm:$0xff]
        %v1252 = vld [vmem:[%s11 + $0x140] sm:$0xff]
        %v1253 = vld [vmem:[%s11 + $0x148] sm:$0xff]
        %v1254 = vld [vmem:[%s11 + $0x150] sm:$0xff]
        %v1255 = vld [vmem:[%s11 + $0x158] sm:$0xff]
        %v1256 = vld [vmem:[%s11 + $0x160] sm:$0xff]
        %v1257 = vld [vmem:[%s11 + $0x168] sm:$0xff]
        %v1258 = vld [vmem:[%s11 + $0x170] sm:$0xff]
        %v1259 = vld [vmem:[%s11 + $0x178] sm:$0xff]
        %v1260 = vld [vmem:[%s11 + $0x180] sm:$0xff]
        %v1261 = vld [vmem:[%s11 + $0x188] sm:$0xff]
        %v1262 = vld [vmem:[%s11 + $0x190] sm:$0xff]
        %v1263 = vld [vmem:[%s11 + $0x198] sm:$0xff]
        %v1264 = vld [vmem:[%s11 + $0x1a0] sm:$0xff]
        %v1265 = vld [vmem:[%s11 + $0x1a8] sm:$0xff]
        %v1266 = vld [vmem:[%s11 + $0x1b0] sm:$0xff]
        %v1267 = vld [vmem:[%s11 + $0x1b8] sm:$0xff]
        %v1268 = vld [vmem:[%s11 + $0x1c0] sm:$0xff]
        %v1269 = vld [vmem:[%s11 + $0x1c8] sm:$0xff]
        %v1270 = vld [vmem:[%s11 + $0x1d0] sm:$0xff]
        %v1271 = vld [vmem:[%s11 + $0x1d8] sm:$0xff]
        %v1272 = vld [vmem:[%s11 + $0x1e0] sm:$0xff]
        %v1273 = vld [vmem:[%s11 + $0x1e8] sm:$0xff]
        %v1274 = vld [vmem:[%s11 + $0x1f0] sm:$0xff]
        %v1275 = vld [vmem:[%s11 + $0x1f8] sm:$0xff]
        %v1276 = vld [vmem:[%s11 + $0x200] sm:$0xff]
        %v1277 = vld [vmem:[%s11 + $0x208] sm:$0xff]
        %v1278 = vld [vmem:[%s11 + $0x210] sm:$0xff]
        %v1279 = vld [vmem:[%s11 + $0x218] sm:$0xff]
        %v1280 = vld [vmem:[%s11 + $0x220] sm:$0xff]
        %v1281 = vld [vmem:[%s11 + $0x228] sm:$0xff]
        %v1282 = vld [vmem:[%s11 + $0x230] sm:$0xff]
        %v1283 = vld [vmem:[%s11 + $0x238] sm:$0xff]
        %v1284 = vld [vmem:[%s11 + $0x240] sm:$0xff]
        %v1285 = vld [vmem:[%s11 + $0x248] sm:$0xff]
        %v1286 = vld [vmem:[%s11 + $0x250] sm:$0xff]
        %v1287 = vld [vmem:[%s11 + $0x258] sm:$0xff]
        %v1288 = vld [vmem:[%s11 + $0x260] sm:$0xff]
        %v1289 = vld [vmem:[%s11 + $0x268] sm:$0xff]
        %v1290 = vld [vmem:[%s11 + $0x270] sm:$0xff]
        %v1291 = vld [vmem:[%s11 + $0x278] sm:$0xff]
        %v1292 = vld [vmem:[%s11 + $0x280] sm:$0xff]
        %v1293 = vld [vmem:[%s11 + $0x288] sm:$0xff]
        %v1294 = vld [vmem:[%s11 + $0x290] sm:$0xff]
        %v1295 = vld [vmem:[%s11 + $0x298] sm:$0xff]
        %v1296 = vld [vmem:[%s11 + $0x2a0] sm:$0xff]
        %v1297 = vld [vmem:[%s11 + $0x2a8] sm:$0xff]
        %v1298 = vld [vmem:[%s11 + $0x2b0] sm:$0xff]
        %v1299 = vld [vmem:[%s11 + $0x2b8] sm:$0xff]
        %v1300 = vld [vmem:[%s11 + $0x2c0] sm:$0xff]
        %v1301 = vld [vmem:[%s11 + $0x2c8] sm:$0xff]
        %v1302 = vld [vmem:[%s11 + $0x2d0] sm:$0xff]
        %v1303 = vld [vmem:[%s11 + $0x2d8] sm:$0xff]
        %v1304 = vld [vmem:[%s11 + $0x2e0] sm:$0xff]
        %v1305 = vld [vmem:[%s11 + $0x2e8] sm:$0xff]
        %v1306 = vld [vmem:[%s11 + $0x2f0] sm:$0xff]
        %v1307 = vld [vmem:[%s11 + $0x2f8] sm:$0xff]
        %v1308 = vld [vmem:[%s11 + $0x300] sm:$0xff]
        %v1309 = vld [vmem:[%s11 + $0x308] sm:$0xff]
        %v1310 = vld [vmem:[%s11 + $0x310] sm:$0xff]
        %v1311 = vld [vmem:[%s11 + $0x318] sm:$0xff]
        %v1312 = vld [vmem:[%s11 + $0x320] sm:$0xff]
        %v1313 = vld [vmem:[%s11 + $0x328] sm:$0xff]
        %v1314 = vld [vmem:[%s11 + $0x330] sm:$0xff]
        %v1315 = vld [vmem:[%s11 + $0x338] sm:$0xff]
        %v1316 = vld [vmem:[%s11 + $0x340] sm:$0xff]
        %v1317 = vld [vmem:[%s11 + $0x348] sm:$0xff]
        %v1318 = vld [vmem:[%s11 + $0x350] sm:$0xff]
        %v1319 = vld [vmem:[%s11 + $0x358] sm:$0xff]
        %v1320 = vld [vmem:[%s11 + $0x360] sm:$0xff]
        %v1321 = vld [vmem:[%s11 + $0x368] sm:$0xff]
        %v1322 = vld [vmem:[%s11 + $0x370] sm:$0xff]
        %v1323 = vld [vmem:[%s11 + $0x378] sm:$0xff]
        %v1324 = vld [vmem:[%s11 + $0x380] sm:$0xff]
        %v1325 = vld [vmem:[%s11 + $0x388] sm:$0xff]
        %v1326 = vld [vmem:[%s11 + $0x390] sm:$0xff]
        %v1327 = vld [vmem:[%s11 + $0x398] sm:$0xff]
        %v1328 = vld [vmem:[%s11 + $0x3a0] sm:$0xff]
        %v1329 = vld [vmem:[%s11 + $0x3a8] sm:$0xff]
        %v1330 = vld [vmem:[%s11 + $0x3b0] sm:$0xff]
        %v1331 = vld [vmem:[%s11 + $0x3b8] sm:$0xff]
        %v1332 = vld [vmem:[%s11 + $0x3c0] sm:$0xff]
        %v1333 = vld [vmem:[%s11 + $0x3c8] sm:$0xff]
        %v1334 = vld [vmem:[%s11 + $0x3d0] sm:$0xff]
        %v1335 = vld [vmem:[%s11 + $0x3d8] sm:$0xff]
        %v1336 = vld [vmem:[%s11 + $0x3e0] sm:$0xff]
        %v1337 = vld [vmem:[%s11 + $0x3e8] sm:$0xff]
        %v1338 = vld [vmem:[%s11 + $0x3f0] sm:$0xff]
        %v1339 = vld [vmem:[%s11 + $0x3f8] sm:$0xff]
        %v1340 = vld [vmem:[%s11 + $0x400] sm:$0xff]
        %v1341 = vld [vmem:[%s11 + $0x408] sm:$0xff]
        %v1342 = vld [vmem:[%s11 + $0x410] sm:$0xff]
        %v1343 = vld [vmem:[%s11 + $0x418] sm:$0xff]
        %v1344 = vld [vmem:[%s11 + $0x420] sm:$0xff]
        %v1345 = vld [vmem:[%s11 + $0x428] sm:$0xff]
        %v1346 = vld [vmem:[%s11 + $0x430] sm:$0xff]
        %v1347 = vld [vmem:[%s11 + $0x438] sm:$0xff]
        %v1348 = vld [vmem:[%s11 + $0x440] sm:$0xff]
        %v1349 = vld [vmem:[%s11 + $0x448] sm:$0xff]
        %v1350 = vld [vmem:[%s11 + $0x450] sm:$0xff]
        %v1351 = vld [vmem:[%s11 + $0x458] sm:$0xff]
        %v1352 = vld [vmem:[%s11 + $0x460] sm:$0xff]
        %v1353 = vld [vmem:[%s11 + $0x468] sm:$0xff]
        %v1354 = vld [vmem:[%s11 + $0x470] sm:$0xff]
        %v1355 = vld [vmem:[%s11 + $0x478] sm:$0xff]
        %v1356 = vld [vmem:[%s11 + $0x480] sm:$0xff]
        %v1357 = vld [vmem:[%s11 + $0x488] sm:$0xff]
        %v1358 = vld [vmem:[%s11 + $0x490] sm:$0xff]
        %v1359 = vld [vmem:[%s11 + $0x498] sm:$0xff]
        %v1360 = vld [vmem:[%s11 + $0x4a0] sm:$0xff]
        %v1361 = vld [vmem:[%s11 + $0x4a8] sm:$0xff]
        %v1362 = vld [vmem:[%s11 + $0x4b0] sm:$0xff]
        %v1363 = vld [vmem:[%s11 + $0x4b8] sm:$0xff]
        %v1364 = vld [vmem:[%s11 + $0x4c0] sm:$0xff]
        %v1365 = vld [vmem:[%s11 + $0x4c8] sm:$0xff]
        %v1366 = vld [vmem:[%s11 + $0x4d0] sm:$0xff]
        %v1367 = vld [vmem:[%s11 + $0x4d8] sm:$0xff]
        %v1368 = vld [vmem:[%s11 + $0x4e0] sm:$0xff]
        %v1369 = vld [vmem:[%s11 + $0x4e8] sm:$0xff]
        %v1370 = vld [vmem:[%s11 + $0x4f0] sm:$0xff]
        %v1371 = vld [vmem:[%s11 + $0x4f8] sm:$0xff]
        %v1372 = vld [vmem:[%s11 + $0x500] sm:$0xff]
        %v1373 = vld [vmem:[%s11 + $0x508] sm:$0xff]
        %v1374 = vld [vmem:[%s11 + $0x510] sm:$0xff]
        %v1375 = vld [vmem:[%s11 + $0x518] sm:$0xff]
        %v1376 = vld [vmem:[%s11 + $0x520] sm:$0xff]
        %v1377 = vld [vmem:[%s11 + $0x528] sm:$0xff]
        %v1378 = vld [vmem:[%s11 + $0x530] sm:$0xff]
        %v1379 = vld [vmem:[%s11 + $0x538] sm:$0xff]
        %v1380 = vld [vmem:[%s11 + $0x540] sm:$0xff]
        %v1381 = vld [vmem:[%s11 + $0x548] sm:$0xff]
        %v1382 = vld [vmem:[%s11 + $0x550] sm:$0xff]
        %v1383 = vld [vmem:[%s11 + $0x558] sm:$0xff]
        %v1384 = vld [vmem:[%s11 + $0x560] sm:$0xff]
        %v1385 = vld [vmem:[%s11 + $0x568] sm:$0xff]
        %v1386 = vld [vmem:[%s11 + $0x570] sm:$0xff]
        %v1387 = vld [vmem:[%s11 + $0x578] sm:$0xff]
        %v1388 = vld [vmem:[%s11 + $0x580] sm:$0xff]
        %v1389 = vld [vmem:[%s11 + $0x588] sm:$0xff]
        %v1390 = vld [vmem:[%s11 + $0x590] sm:$0xff]
        %v1391 = vld [vmem:[%s11 + $0x598] sm:$0xff]
        %v1392 = vld [vmem:[%s11 + $0x5a0] sm:$0xff]
        %v1393 = vld [vmem:[%s11 + $0x5a8] sm:$0xff]
        %v1394 = vld [vmem:[%s11 + $0x5b0] sm:$0xff]
        %v1395 = vld [vmem:[%s11 + $0x5b8] sm:$0xff]
        %v1396 = vld [vmem:[%s11 + $0x5c0] sm:$0xff]
        %v1397 = vld [vmem:[%s11 + $0x5c8] sm:$0xff]
        %v1398 = vld [vmem:[%s11 + $0x5d0] sm:$0xff]
        %v1399 = vld [vmem:[%s11 + $0x5d8] sm:$0xff]
        %v1400 = vld [vmem:[%s11 + $0x5e0] sm:$0xff]
        %v1401 = vld [vmem:[%s11 + $0x5e8] sm:$0xff]
        %v1402 = vld [vmem:[%s11 + $0x5f0] sm:$0xff]
        %v1403 = vld [vmem:[%s11 + $0x5f8] sm:$0xff]
        %v1404 = vld [vmem:[%s11 + $0x600] sm:$0xff]
        %v1405 = vld [vmem:[%s11 + $0x608] sm:$0xff]
        %v1406 = vld [vmem:[%s11 + $0x610] sm:$0xff]
        %v1407 = vld [vmem:[%s11 + $0x618] sm:$0xff]
        %v1408 = vld [vmem:[%s11 + $0x620] sm:$0xff]
        %v1409 = vld [vmem:[%s11 + $0x628] sm:$0xff]
        %v1410 = vld [vmem:[%s11 + $0x630] sm:$0xff]
        %v1411 = vld [vmem:[%s11 + $0x638] sm:$0xff]
        %v1412 = vld [vmem:[%s11 + $0x640] sm:$0xff]
        %v1413 = vld [vmem:[%s11 + $0x648] sm:$0xff]
        %v1414 = vld [vmem:[%s11 + $0x650] sm:$0xff]
        %v1415 = vld [vmem:[%s11 + $0x658] sm:$0xff]
        %v1416 = vld [vmem:[%s11 + $0x660] sm:$0xff]
        %v1417 = vld [vmem:[%s11 + $0x668] sm:$0xff]
        %v1418 = vld [vmem:[%s11 + $0x670] sm:$0xff]
        %v1419 = vld [vmem:[%s11 + $0x678] sm:$0xff]
        %v1420 = vld [vmem:[%s11 + $0x680] sm:$0xff]
        %v1421 = vld [vmem:[%s11 + $0x688] sm:$0xff]
        %v1422 = vld [vmem:[%s11 + $0x690] sm:$0xff]
        %v1423 = vld [vmem:[%s11 + $0x698] sm:$0xff]
        %v1424 = vld [vmem:[%s11 + $0x6a0] sm:$0xff]
        %v1425 = vld [vmem:[%s11 + $0x6a8] sm:$0xff]
        %v1426 = vld [vmem:[%s11 + $0x6b0] sm:$0xff]
        %v1427 = vld [vmem:[%s11 + $0x6b8] sm:$0xff]
        %v1428 = vld [vmem:[%s11 + $0x6c0] sm:$0xff]
        %v1429 = vld [vmem:[%s11 + $0x6c8] sm:$0xff]
        %v1430 = vld [vmem:[%s11 + $0x6d0] sm:$0xff]
        %v1431 = vld [vmem:[%s11 + $0x6d8] sm:$0xff]
        %v1432 = vld [vmem:[%s11 + $0x6e0] sm:$0xff]
        %v1433 = vld [vmem:[%s11 + $0x6e8] sm:$0xff]
        %v1434 = vld [vmem:[%s11 + $0x6f0] sm:$0xff]
        %v1435 = vld [vmem:[%s11 + $0x6f8] sm:$0xff]
        %v1436 = vld [vmem:[%s12] sm:$0x7f]
        %v1438 = vperm.slane %v1436, 0
        %v1439 = vperm.slane %v1436, 1
        %v1440 = vperm.slane %v1436, 2
        %v1441 = vperm.slane %v1436, 3
        %v1442 = vperm.slane %v1436, 4
        %v1443 = vperm.slane %v1436, 5
        %v1444 = vperm.slane %v1436, 6
        %1452 = vmatpush.msra.mxu0 %v1317
        %1453 = vmatpush.msra.mxu0 %v1310
        %1454 = vmatpush.msra.mxu0 %v1303
        %1455 = vmatpush.msra.mxu0 %v1296
        %1456 = vmatpush.msra.mxu0 %v1289
        %1457 = vmatpush.msra.mxu0 %v1282
        %1458 = vmatpush.msra.mxu0 %v1275
        %1459 = vmatpush.msra.mxu0 %v1268
        %1460 = vmatpush.msra.mxu0 %v1261
        %1461 = vmatpush.msra.mxu0 %v1254
        %1462 = vmatpush.msra.mxu0 %v1247
        %1463 = vmatpush.msra.mxu0 %v1240
        %1464 = vmatpush.msra.mxu0 %v1233
        %1465 = vmatpush.msra.mxu0 %v1226
        %1466 = vmatpush.msra.mxu0 %v1219
        %1467 = vmatpush.msra.mxu0 %v1212
        %1468 = vmatmul.f32.gmra.mxu0 %v1210
        %v1469 = vpop.f32.mrf.mxu0
        %v1470 = vadd.f32 %v1438, %v1469
        %1471 = vdwg.mxu0
        %1472 = vmatpush.msra.mxu0 %v1429
        %1473 = vmatpush.msra.mxu0 %v1422
        %1474 = vmatpush.msra.mxu0 %v1415
        %1475 = vmatpush.msra.mxu0 %v1408
        %1476 = vmatpush.msra.mxu0 %v1401
        %1477 = vmatpush.msra.mxu0 %v1394
        %1478 = vmatpush.msra.mxu0 %v1387
        %1479 = vmatpush.msra.mxu0 %v1380
        %1480 = vmatpush.msra.mxu0 %v1373
        %1481 = vmatpush.msra.mxu0 %v1366
        %1482 = vmatpush.msra.mxu0 %v1359
        %1483 = vmatpush.msra.mxu0 %v1352
        %1484 = vmatpush.msra.mxu0 %v1345
        %1485 = vmatpush.msra.mxu0 %v1338
        %1486 = vmatpush.msra.mxu0 %v1331
        %1487 = vmatpush.msra.mxu0 %v1324
        %1488 = vmatmul.f32.gmra.mxu0 %v1211
        %v1489 = vpop.f32.mrf.mxu0
        %v1490 = vadd.f32 %v1470, %v1489
        %1491 = vdwg.mxu0
        %1492 = vmatpush.msra.mxu0 %v1318
        %1493 = vmatpush.msra.mxu0 %v1311
        %1494 = vmatpush.msra.mxu0 %v1304
        %1495 = vmatpush.msra.mxu0 %v1297
        %1496 = vmatpush.msra.mxu0 %v1290
        %1497 = vmatpush.msra.mxu0 %v1283
        %1498 = vmatpush.msra.mxu0 %v1276
        %1499 = vmatpush.msra.mxu0 %v1269
        %1500 = vmatpush.msra.mxu0 %v1262
        %1501 = vmatpush.msra.mxu0 %v1255
        %1502 = vmatpush.msra.mxu0 %v1248
        %1503 = vmatpush.msra.mxu0 %v1241
        %1504 = vmatpush.msra.mxu0 %v1234
        %1505 = vmatpush.msra.mxu0 %v1227
        %1506 = vmatpush.msra.mxu0 %v1220
        %1507 = vmatpush.msra.mxu0 %v1213
        %1508 = vmatmul.f32.gmra.mxu0 %v1210
        %v1509 = vpop.f32.mrf.mxu0
        %v1510 = vadd.f32 %v1439, %v1509
        %1511 = vdwg.mxu0
        %1512 = vmatpush.msra.mxu0 %v1430
        %1513 = vmatpush.msra.mxu0 %v1423
        %1514 = vmatpush.msra.mxu0 %v1416
        %1515 = vmatpush.msra.mxu0 %v1409
        %1516 = vmatpush.msra.mxu0 %v1402
        %1517 = vmatpush.msra.mxu0 %v1395
        %1518 = vmatpush.msra.mxu0 %v1388
        %1519 = vmatpush.msra.mxu0 %v1381
        %1520 = vmatpush.msra.mxu0 %v1374
        %1521 = vmatpush.msra.mxu0 %v1367
        %1522 = vmatpush.msra.mxu0 %v1360
        %1523 = vmatpush.msra.mxu0 %v1353
        %1524 = vmatpush.msra.mxu0 %v1346
        %1525 = vmatpush.msra.mxu0 %v1339
        %1526 = vmatpush.msra.mxu0 %v1332
        %1527 = vmatpush.msra.mxu0 %v1325
        %1528 = vmatmul.f32.gmra.mxu0 %v1211
        %v1529 = vpop.f32.mrf.mxu0
        %v1530 = vadd.f32 %v1510, %v1529
        %1531 = vdwg.mxu0
        %1532 = vmatpush.msra.mxu0 %v1319
        %1533 = vmatpush.msra.mxu0 %v1312
        %1534 = vmatpush.msra.mxu0 %v1305
        %1535 = vmatpush.msra.mxu0 %v1298
        %1536 = vmatpush.msra.mxu0 %v1291
        %1537 = vmatpush.msra.mxu0 %v1284
        %1538 = vmatpush.msra.mxu0 %v1277
        %1539 = vmatpush.msra.mxu0 %v1270
        %1540 = vmatpush.msra.mxu0 %v1263
        %1541 = vmatpush.msra.mxu0 %v1256
        %1542 = vmatpush.msra.mxu0 %v1249
        %1543 = vmatpush.msra.mxu0 %v1242
        %1544 = vmatpush.msra.mxu0 %v1235
        %1545 = vmatpush.msra.mxu0 %v1228
        %1546 = vmatpush.msra.mxu0 %v1221
        %1547 = vmatpush.msra.mxu0 %v1214
        %1548 = vmatmul.f32.gmra.mxu0 %v1210
        %v1549 = vpop.f32.mrf.mxu0
        %v1550 = vadd.f32 %v1440, %v1549
        %1551 = vdwg.mxu0
        %1552 = vmatpush.msra.mxu0 %v1431
        %1553 = vmatpush.msra.mxu0 %v1424
        %1554 = vmatpush.msra.mxu0 %v1417
        %1555 = vmatpush.msra.mxu0 %v1410
        %1556 = vmatpush.msra.mxu0 %v1403
        %1557 = vmatpush.msra.mxu0 %v1396
        %1558 = vmatpush.msra.mxu0 %v1389
        %1559 = vmatpush.msra.mxu0 %v1382
        %1560 = vmatpush.msra.mxu0 %v1375
        %1561 = vmatpush.msra.mxu0 %v1368
        %1562 = vmatpush.msra.mxu0 %v1361
        %1563 = vmatpush.msra.mxu0 %v1354
        %1564 = vmatpush.msra.mxu0 %v1347
        %1565 = vmatpush.msra.mxu0 %v1340
        %1566 = vmatpush.msra.mxu0 %v1333
        %1567 = vmatpush.msra.mxu0 %v1326
        %1568 = vmatmul.f32.gmra.mxu0 %v1211
        %v1569 = vpop.f32.mrf.mxu0
        %v1570 = vadd.f32 %v1550, %v1569
        %1571 = vdwg.mxu0
        %1572 = vmatpush.msra.mxu0 %v1320
        %1573 = vmatpush.msra.mxu0 %v1313
        %1574 = vmatpush.msra.mxu0 %v1306
        %1575 = vmatpush.msra.mxu0 %v1299
        %1576 = vmatpush.msra.mxu0 %v1292
        %1577 = vmatpush.msra.mxu0 %v1285
        %1578 = vmatpush.msra.mxu0 %v1278
        %1579 = vmatpush.msra.mxu0 %v1271
        %1580 = vmatpush.msra.mxu0 %v1264
        %1581 = vmatpush.msra.mxu0 %v1257
        %1582 = vmatpush.msra.mxu0 %v1250
        %1583 = vmatpush.msra.mxu0 %v1243
        %1584 = vmatpush.msra.mxu0 %v1236
        %1585 = vmatpush.msra.mxu0 %v1229
        %1586 = vmatpush.msra.mxu0 %v1222
        %1587 = vmatpush.msra.mxu0 %v1215
        %1588 = vmatmul.f32.gmra.mxu0 %v1210
        %v1589 = vpop.f32.mrf.mxu0
        %v1590 = vadd.f32 %v1441, %v1589
        %1591 = vdwg.mxu0
        %1592 = vmatpush.msra.mxu0 %v1432
        %1593 = vmatpush.msra.mxu0 %v1425
        %1594 = vmatpush.msra.mxu0 %v1418
        %1595 = vmatpush.msra.mxu0 %v1411
        %1596 = vmatpush.msra.mxu0 %v1404
        %1597 = vmatpush.msra.mxu0 %v1397
        %1598 = vmatpush.msra.mxu0 %v1390
        %1599 = vmatpush.msra.mxu0 %v1383
        %1600 = vmatpush.msra.mxu0 %v1376
        %1601 = vmatpush.msra.mxu0 %v1369
        %1602 = vmatpush.msra.mxu0 %v1362
        %1603 = vmatpush.msra.mxu0 %v1355
        %1604 = vmatpush.msra.mxu0 %v1348
        %1605 = vmatpush.msra.mxu0 %v1341
        %1606 = vmatpush.msra.mxu0 %v1334
        %1607 = vmatpush.msra.mxu0 %v1327
        %1608 = vmatmul.f32.gmra.mxu0 %v1211
        %v1609 = vpop.f32.mrf.mxu0
        %v1610 = vadd.f32 %v1590, %v1609
        %1611 = vdwg.mxu0
        %1612 = vmatpush.msra.mxu0 %v1321
        %1613 = vmatpush.msra.mxu0 %v1314
        %1614 = vmatpush.msra.mxu0 %v1307
        %1615 = vmatpush.msra.mxu0 %v1300
        %1616 = vmatpush.msra.mxu0 %v1293
        %1617 = vmatpush.msra.mxu0 %v1286
        %1618 = vmatpush.msra.mxu0 %v1279
        %1619 = vmatpush.msra.mxu0 %v1272
        %1620 = vmatpush.msra.mxu0 %v1265
        %1621 = vmatpush.msra.mxu0 %v1258
        %1622 = vmatpush.msra.mxu0 %v1251
        %1623 = vmatpush.msra.mxu0 %v1244
        %1624 = vmatpush.msra.mxu0 %v1237
        %1625 = vmatpush.msra.mxu0 %v1230
        %1626 = vmatpush.msra.mxu0 %v1223
        %1627 = vmatpush.msra.mxu0 %v1216
        %1628 = vmatmul.f32.gmra.mxu0 %v1210
        %v1629 = vpop.f32.mrf.mxu0
        %v1630 = vadd.f32 %v1442, %v1629
        %1631 = vdwg.mxu0
        %1632 = vmatpush.msra.mxu0 %v1433
        %1633 = vmatpush.msra.mxu0 %v1426
        %1634 = vmatpush.msra.mxu0 %v1419
        %1635 = vmatpush.msra.mxu0 %v1412
        %1636 = vmatpush.msra.mxu0 %v1405
        %1637 = vmatpush.msra.mxu0 %v1398
        %1638 = vmatpush.msra.mxu0 %v1391
        %1639 = vmatpush.msra.mxu0 %v1384
        %1640 = vmatpush.msra.mxu0 %v1377
        %1641 = vmatpush.msra.mxu0 %v1370
        %1642 = vmatpush.msra.mxu0 %v1363
        %1643 = vmatpush.msra.mxu0 %v1356
        %1644 = vmatpush.msra.mxu0 %v1349
        %1645 = vmatpush.msra.mxu0 %v1342
        %1646 = vmatpush.msra.mxu0 %v1335
        %1647 = vmatpush.msra.mxu0 %v1328
        %1648 = vmatmul.f32.gmra.mxu0 %v1211
        %v1649 = vpop.f32.mrf.mxu0
        %v1650 = vadd.f32 %v1630, %v1649
        %1651 = vdwg.mxu0
        %1652 = vmatpush.msra.mxu0 %v1322
        %1653 = vmatpush.msra.mxu0 %v1315
        %1654 = vmatpush.msra.mxu0 %v1308
        %1655 = vmatpush.msra.mxu0 %v1301
        %1656 = vmatpush.msra.mxu0 %v1294
        %1657 = vmatpush.msra.mxu0 %v1287
        %1658 = vmatpush.msra.mxu0 %v1280
        %1659 = vmatpush.msra.mxu0 %v1273
        %1660 = vmatpush.msra.mxu0 %v1266
        %1661 = vmatpush.msra.mxu0 %v1259
        %1662 = vmatpush.msra.mxu0 %v1252
        %1663 = vmatpush.msra.mxu0 %v1245
        %1664 = vmatpush.msra.mxu0 %v1238
        %1665 = vmatpush.msra.mxu0 %v1231
        %1666 = vmatpush.msra.mxu0 %v1224
        %1667 = vmatpush.msra.mxu0 %v1217
        %1668 = vmatmul.f32.gmra.mxu0 %v1210
        %v1669 = vpop.f32.mrf.mxu0
        %v1670 = vadd.f32 %v1443, %v1669
        %1671 = vdwg.mxu0
        %1672 = vmatpush.msra.mxu0 %v1434
        %1673 = vmatpush.msra.mxu0 %v1427
        %1674 = vmatpush.msra.mxu0 %v1420
        %1675 = vmatpush.msra.mxu0 %v1413
        %1676 = vmatpush.msra.mxu0 %v1406
        %1677 = vmatpush.msra.mxu0 %v1399
        %1678 = vmatpush.msra.mxu0 %v1392
        %1679 = vmatpush.msra.mxu0 %v1385
        %1680 = vmatpush.msra.mxu0 %v1378
        %1681 = vmatpush.msra.mxu0 %v1371
        %1682 = vmatpush.msra.mxu0 %v1364
        %1683 = vmatpush.msra.mxu0 %v1357
        %1684 = vmatpush.msra.mxu0 %v1350
        %1685 = vmatpush.msra.mxu0 %v1343
        %1686 = vmatpush.msra.mxu0 %v1336
        %1687 = vmatpush.msra.mxu0 %v1329
        %1688 = vmatmul.f32.gmra.mxu0 %v1211
        %v1689 = vpop.f32.mrf.mxu0
        %v1690 = vadd.f32 %v1670, %v1689
        %1691 = vdwg.mxu0
        %1692 = vmatpush.msra.mxu0 %v1323
        %1693 = vmatpush.msra.mxu0 %v1316
        %1694 = vmatpush.msra.mxu0 %v1309
        %1695 = vmatpush.msra.mxu0 %v1302
        %1696 = vmatpush.msra.mxu0 %v1295
        %1697 = vmatpush.msra.mxu0 %v1288
        %1698 = vmatpush.msra.mxu0 %v1281
        %1699 = vmatpush.msra.mxu0 %v1274
        %1700 = vmatpush.msra.mxu0 %v1267
        %1701 = vmatpush.msra.mxu0 %v1260
        %1702 = vmatpush.msra.mxu0 %v1253
        %1703 = vmatpush.msra.mxu0 %v1246
        %1704 = vmatpush.msra.mxu0 %v1239
        %1705 = vmatpush.msra.mxu0 %v1232
        %1706 = vmatpush.msra.mxu0 %v1225
        %1707 = vmatpush.msra.mxu0 %v1218
        %1708 = vmatmul.f32.gmra.mxu0 %v1210
        %v1709 = vpop.f32.mrf.mxu0
        %v1710 = vadd.f32 %v1444, %v1709
        %1711 = vdwg.mxu0
        %1712 = vmatpush.msra.mxu0 %v1435
        %1713 = vmatpush.msra.mxu0 %v1428
        %1714 = vmatpush.msra.mxu0 %v1421
        %1715 = vmatpush.msra.mxu0 %v1414
        %1716 = vmatpush.msra.mxu0 %v1407
        %1717 = vmatpush.msra.mxu0 %v1400
        %1718 = vmatpush.msra.mxu0 %v1393
        %1719 = vmatpush.msra.mxu0 %v1386
        %1720 = vmatpush.msra.mxu0 %v1379
        %1721 = vmatpush.msra.mxu0 %v1372
        %1722 = vmatpush.msra.mxu0 %v1365
        %1723 = vmatpush.msra.mxu0 %v1358
        %1724 = vmatpush.msra.mxu0 %v1351
        %1725 = vmatpush.msra.mxu0 %v1344
        %1726 = vmatpush.msra.mxu0 %v1337
        %1727 = vmatpush.msra.mxu0 %v1330
        %1728 = vmatmul.f32.gmra.mxu0 %v1211
        %v1729 = vpop.f32.mrf.mxu0
        %v1730 = vadd.f32 %v1710, %v1729
        %1731 = vdwg.mxu0
        %v1732 = vxor.u32 %v1490, 2147483648
        %v1733 = vxor.u32 %v1530, 2147483648
        %v1734 = vxor.u32 %v1570, 2147483648
        %v1735 = vxor.u32 %v1610, 2147483648
        %v1736 = vxor.u32 %v1650, 2147483648
        %v1737 = vxor.u32 %v1690, 2147483648
        %v1738 = vxor.u32 %v1730, 2147483648
        %v1739 = vmul.f32 %v1732, 1.442695
        %v1740 = vpow.pop %v1739
        %v1741 = vmul.f32 %v1733, 1.442695
        %v1742 = vpow.pop %v1741
        %v1743 = vmul.f32 %v1734, 1.442695
        %v1744 = vpow.pop %v1743
        %v1745 = vmul.f32 %v1735, 1.442695
        %v1746 = vpow.pop %v1745
        %v1747 = vmul.f32 %v1736, 1.442695
        %v1748 = vpow.pop %v1747
        %v1749 = vmul.f32 %v1737, 1.442695
        %v1750 = vpow.pop %v1749
        %v1751 = vmul.f32 %v1738, 1.442695
        %v1752 = vpow.pop %v1751
        %v1753 = vadd.f32 %v1740, 1.0
        %v1754 = vadd.f32 %v1742, 1.0
        %v1755 = vadd.f32 %v1744, 1.0
        %v1756 = vadd.f32 %v1746, 1.0
        %v1757 = vadd.f32 %v1748, 1.0
        %v1758 = vadd.f32 %v1750, 1.0
        %v1759 = vadd.f32 %v1752, 1.0
        %v1760 = vrcp.pop %v1753
        %v1761 = vmul.f32 %v1753, %v1760
        %v1762 = vsub.f32 1.0, %v1761
        %v1763 = vmul.f32 %v1760, %v1762
        %v1764 = vadd.f32 %v1760, %v1763
        %vm1765 = vweird.f32 %v1753
        %vm1766 = vweird.f32 %v1760
        %vm1767 = vmor %vm1765, %vm1766
        %v1768 = vsel %vm1767, %v1760, %v1764
        %v1769 = vand.u32 2147483647, %v1753
        %vm1770 = vcmp.eq.f32.partialorder %v1769, 8.507059e+37
        %v1771 = vand.u32 %v1753, 2147483648
        %v1772 = vor.u32 1.1754944e-38, %v1771
        %v1773 = vsel %vm1770, %v1772, %v1768
        %v1774 = vmul.f32 1.0, %v1773
        %v1775 = vrcp.pop %v1754
        %v1776 = vmul.f32 %v1754, %v1775
        %v1777 = vsub.f32 1.0, %v1776
        %v1778 = vmul.f32 %v1775, %v1777
        %v1779 = vadd.f32 %v1775, %v1778
        %vm1780 = vweird.f32 %v1754
        %vm1781 = vweird.f32 %v1775
        %vm1782 = vmor %vm1780, %vm1781
        %v1783 = vsel %vm1782, %v1775, %v1779
        %v1784 = vand.u32 2147483647, %v1754
        %vm1785 = vcmp.eq.f32.partialorder %v1784, 8.507059e+37
        %v1786 = vand.u32 %v1754, 2147483648
        %v1787 = vor.u32 1.1754944e-38, %v1786
        %v1788 = vsel %vm1785, %v1787, %v1783
        %v1789 = vmul.f32 1.0, %v1788
        %v1790 = vrcp.pop %v1755
        %v1791 = vmul.f32 %v1755, %v1790
        %v1792 = vsub.f32 1.0, %v1791
        %v1793 = vmul.f32 %v1790, %v1792
        %v1794 = vadd.f32 %v1790, %v1793
        %vm1795 = vweird.f32 %v1755
        %vm1796 = vweird.f32 %v1790
        %vm1797 = vmor %vm1795, %vm1796
        %v1798 = vsel %vm1797, %v1790, %v1794
        %v1799 = vand.u32 2147483647, %v1755
        %vm1800 = vcmp.eq.f32.partialorder %v1799, 8.507059e+37
        %v1801 = vand.u32 %v1755, 2147483648
        %v1802 = vor.u32 1.1754944e-38, %v1801
        %v1803 = vsel %vm1800, %v1802, %v1798
        %v1804 = vmul.f32 1.0, %v1803
        %v1805 = vrcp.pop %v1756
        %v1806 = vmul.f32 %v1756, %v1805
        %v1807 = vsub.f32 1.0, %v1806
        %v1808 = vmul.f32 %v1805, %v1807
        %v1809 = vadd.f32 %v1805, %v1808
        %vm1810 = vweird.f32 %v1756
        %vm1811 = vweird.f32 %v1805
        %vm1812 = vmor %vm1810, %vm1811
        %v1813 = vsel %vm1812, %v1805, %v1809
        %v1814 = vand.u32 2147483647, %v1756
        %vm1815 = vcmp.eq.f32.partialorder %v1814, 8.507059e+37
        %v1816 = vand.u32 %v1756, 2147483648
        %v1817 = vor.u32 1.1754944e-38, %v1816
        %v1818 = vsel %vm1815, %v1817, %v1813
        %v1819 = vmul.f32 1.0, %v1818
        %v1820 = vrcp.pop %v1757
        %v1821 = vmul.f32 %v1757, %v1820
        %v1822 = vsub.f32 1.0, %v1821
        %v1823 = vmul.f32 %v1820, %v1822
        %v1824 = vadd.f32 %v1820, %v1823
        %vm1825 = vweird.f32 %v1757
        %vm1826 = vweird.f32 %v1820
        %vm1827 = vmor %vm1825, %vm1826
        %v1828 = vsel %vm1827, %v1820, %v1824
        %v1829 = vand.u32 2147483647, %v1757
        %vm1830 = vcmp.eq.f32.partialorder %v1829, 8.507059e+37
        %v1831 = vand.u32 %v1757, 2147483648
        %v1832 = vor.u32 1.1754944e-38, %v1831
        %v1833 = vsel %vm1830, %v1832, %v1828
        %v1834 = vmul.f32 1.0, %v1833
        %v1835 = vrcp.pop %v1758
        %v1836 = vmul.f32 %v1758, %v1835
        %v1837 = vsub.f32 1.0, %v1836
        %v1838 = vmul.f32 %v1835, %v1837
        %v1839 = vadd.f32 %v1835, %v1838
        %vm1840 = vweird.f32 %v1758
        %vm1841 = vweird.f32 %v1835
        %vm1842 = vmor %vm1840, %vm1841
        %v1843 = vsel %vm1842, %v1835, %v1839
        %v1844 = vand.u32 2147483647, %v1758
        %vm1845 = vcmp.eq.f32.partialorder %v1844, 8.507059e+37
        %v1846 = vand.u32 %v1758, 2147483648
        %v1847 = vor.u32 1.1754944e-38, %v1846
        %v1848 = vsel %vm1845, %v1847, %v1843
        %v1849 = vmul.f32 1.0, %v1848
        %v1850 = vrcp.pop %v1759
        %v1851 = vmul.f32 %v1759, %v1850
        %v1852 = vsub.f32 1.0, %v1851
        %v1853 = vmul.f32 %v1850, %v1852
        %v1854 = vadd.f32 %v1850, %v1853
        %vm1855 = vweird.f32 %v1759
        %vm1856 = vweird.f32 %v1850
        %vm1857 = vmor %vm1855, %vm1856
        %v1858 = vsel %vm1857, %v1850, %v1854
        %v1859 = vand.u32 2147483647, %v1759
        %vm1860 = vcmp.eq.f32.partialorder %v1859, 8.507059e+37
        %v1861 = vand.u32 %v1759, 2147483648
        %v1862 = vor.u32 1.1754944e-38, %v1861
        %v1863 = vsel %vm1860, %v1862, %v1858
        %v1864 = vmul.f32 1.0, %v1863
        %1865 = vst [vmem:[%s471] sm:$0xff] %v1774
        %1866 = vst [vmem:[%s471 + $0x8] sm:$0xff] %v1789
        %1867 = vst [vmem:[%s471 + $0x10] sm:$0xff] %v1804
        %1868 = vst [vmem:[%s471 + $0x18] sm:$0xff] %v1819
        %1869 = vst [vmem:[%s471 + $0x20] sm:$0xff] %v1834
        %1870 = vst [vmem:[%s471 + $0x28] sm:$0xff] %v1849
        %1871 = vst.msk [vmem:[%s471 + $0x30] sm:$0xff] %vm686, %v1864
        %s1872 = sand.u32 %s318, 1
        %s1873 = scalar_lea.sflag [#allocation3], %s1872
        %s1874 = sand.u32 %s318, 1
        %s1875 = smul.addr %s1874, 8
        %s1876 = scalar_lea.vmem [#allocation2], %s1875
        %s1877 = sand.u32 %s344, 1
        %s1878 = scalar_lea.sflag [#allocation5], %s1877
        %s1879 = sand.u32 %s344, 1
        %s1880 = smul.addr %s1879, 56
        %s1881 = scalar_lea.vmem [#allocation4], %s1880
        // Predicated region
        $region73: #{autoencoder_forward.1} parent=71 // pred_check
          %p1882 = pneg %p328
        $region74: #{autoencoder_forward.1} parent=71 // pred_check_branch
          %1884 = sbr.rel (%p1882) target = $region76
        $region75: #{autoencoder_forward.1} parent=71 // pred_region
          %1886 = vsyncadd %s1873, 0
          %s1887 = smul.addr %s32, 8
          %s1888 = scalar_lea.hbm %s13, %s1887
          %s1890 = sshll.u32 %s1876, 4
          %s1891 = int_to_ptr.vmem [resolvable:$true] %s1890
          %s1892 = sshll.u32 %s1888, 4
          %s1893 = int_to_ptr.hbm [resolvable:$true] %s1892
          %1895 = dma.vmem_to_hbm [thread:$0]  %s1891, 128, %s1893, %s1873
        $region76: #{autoencoder_forward.1} parent=71 // pred_fallthru
          _
        // Predicated region
        $region77: #{autoencoder_forward.1} parent=71 // pred_check
          %p1896 = pneg %p354
        $region78: #{autoencoder_forward.1} parent=71 // pred_check_branch
          %1898 = sbr.rel (%p1896) target = $region80
        $region79: #{autoencoder_forward.1} parent=71 // pred_region
          %1900 = vsyncadd %s1878, 0
          %s1901 = smul.addr %s32, 7
          %s1902 = smul.addr %s1901, 8
          %s1903 = scalar_lea.hbm %s14, %s1902
          %s1905 = sshll.u32 %s1881, 4
          %s1906 = int_to_ptr.vmem [resolvable:$true] %s1905
          %s1907 = sshll.u32 %s1903, 4
          %s1908 = int_to_ptr.hbm [resolvable:$true] %s1907
          %1910 = dma.vmem_to_hbm [thread:$0]  %s1906, 896, %s1908, %s1878
        $region80: #{autoencoder_forward.1} parent=71 // pred_fallthru
          _
      $region72: #{autoencoder_forward.1} parent=5 // pred_fallthru
        _
      %p1911 = scmp.le.s32.totalorder 2, %s27
      // Predicated region
      $region81: #{autoencoder_forward.1} parent=5 // pred_check
        %p1912 = pneg %p1911
      $region82: #{autoencoder_forward.1} parent=5 // pred_check_branch
        %1914 = sbr.rel (%p1912) target = $region84
      $region83: #{autoencoder_forward.1} parent=5 // pred_region
        %s1915 = ssub.s32 %s27, 2
        // Predicated region
        $region85: #{autoencoder_forward.1} parent=83 // pred_check
          %p1916 = pneg %p334
        $region86: #{autoencoder_forward.1} parent=83 // pred_check_branch
          %1918 = sbr.rel (%p1916) target = $region88
        $region87: #{autoencoder_forward.1} parent=83 // pred_region
          %s1919 = sand.u32 %s319, 1
          %s1920 = scalar_lea.sflag [#allocation3], %s1919
          %s1921 = sand.u32 %s319, 1
          %s1922 = smul.addr %s1921, 8
          %s1923 = scalar_lea.vmem [#allocation2], %s1922
          %1925 = dma.done %s1920, 128
        $region88: #{autoencoder_forward.1} parent=83 // pred_fallthru
          _
        // Predicated region
        $region89: #{autoencoder_forward.1} parent=83 // pred_check
          %p1926 = pneg %p360
        $region90: #{autoencoder_forward.1} parent=83 // pred_check_branch
          %1928 = sbr.rel (%p1926) target = $region92
        $region91: #{autoencoder_forward.1} parent=83 // pred_region
          %s1929 = sand.u32 %s345, 1
          %s1930 = scalar_lea.sflag [#allocation5], %s1929
          %s1931 = sand.u32 %s345, 1
          %s1932 = smul.addr %s1931, 56
          %s1933 = scalar_lea.vmem [#allocation4], %s1932
          %1935 = dma.done %s1930, 896
        $region92: #{autoencoder_forward.1} parent=83 // pred_fallthru
          _
      $region84: #{autoencoder_forward.1} parent=5 // pred_fallthru
        _
    $region6: #{autoencoder_forward.1} parent=1 // loop_footer
      %s31 = sadd.s32 1, %s27
    $region7: #{autoencoder_forward.1} parent=1 // loop_footer_branch
      %26 = sbr.rel target = $region3
    $region8: #{autoencoder_forward.1} parent=1 // loop_exit
      _
    %1936 = vsyncpa [#allocation3], 1
    %s1937 = scalar_lea.sflag [#allocation3], 1
    %1938 = vsyncpa %s1937, 1
    %1939 = vsyncpa [#allocation5], 1
    %s1940 = scalar_lea.sflag [#allocation5], 1
    %1941 = vsyncpa %s1940, 1

</llo_original>
